<compile_context>
chip_gen: v7x
topology: tpu7x:2x2x1
jax: 0.10.0
libtpu: 0.0.40
codegen_flags: <defaults>
</compile_context>

<pallas_src>
import math

import jax
import jax.numpy as jnp
from jax.experimental import pallas as pl
from jax.experimental.pallas import tpu as pltpu

RADIUS = 1  # module default


def _dgf_kernel(xlr_ref, ylr_ref, xhr_ref,
                w1a_ref, w1b_ref, b1_ref, w2_ref, b2_ref, w3_ref,
                box_ref, invn_ref, up_ref, out_ref):
    x = xlr_ref[0]          # (C, S)   flattened low-res guide
    y = ylr_ref[0]          # (C, S)   flattened low-res target
    xh = xhr_ref[0]         # (C, Sh)  flattened high-res guide
    box = box_ref[...]      # (S, S)   banded 0/1 box-filter operator
    inv_n = invn_ref[...]   # (1, S)   reciprocal valid-neighbor counts

    def boxf(t):            # dilated all-ones 3x3, zero padding: (C,S)@(S,S) on MXU
        return jnp.dot(t, box, preferred_element_type=jnp.float32)

    mean_x = boxf(x) * inv_n
    mean_y = boxf(y) * inv_n
    cov_xy = boxf(x * y) * inv_n - mean_x * mean_y
    var_x = boxf(x * x) * inv_n - mean_x * mean_x

    def mm(w, t):           # 1x1 conv == channel matmul
        return jnp.dot(w, t, preferred_element_type=jnp.float32)

    # conv_a: split first weight instead of concatenating [cov_xy, var_x].
    h1 = jnp.maximum(mm(w1a_ref[...], cov_xy) + mm(w1b_ref[...], var_x)
                     + b1_ref[...], 0.0)                      # (32, S)
    h2 = jnp.maximum(mm(w2_ref[...], h1) + b2_ref[...], 0.0)  # (32, S)
    A = mm(w3_ref[...], h2)                                   # (C, S)
    b = mean_y - A * mean_x                                   # (C, S)

    up = up_ref[...]        # (S, Sh)  bilinear align_corners upsample operator
    mean_A = jnp.dot(A, up, preferred_element_type=jnp.float32)   # (C, Sh)
    mean_b = jnp.dot(b, up, preferred_element_type=jnp.float32)   # (C, Sh)

    out_ref[0] = jnp.clip(mean_A * xh + mean_b, 0.0, 1.0)


def _interp_matrix(out_size, in_size, dtype=jnp.float32):
    """Row matrix (out_size, in_size) for 1-D bilinear resize, align_corners=True."""
    if out_size == 1:
        src = jnp.zeros((1,), jnp.float32)
    else:
        src = jnp.arange(out_size, dtype=jnp.float32) * (in_size - 1) / (out_size - 1)
    i0 = jnp.clip(jnp.floor(src).astype(jnp.int32), 0, in_size - 1)
    i1 = jnp.minimum(i0 + 1, in_size - 1)
    frac = src - i0.astype(jnp.float32)
    cols = jnp.arange(in_size)
    m = ((cols[None, :] == i0[:, None]) * (1.0 - frac)[:, None]
         + (cols[None, :] == i1[:, None]) * frac[:, None])
    return m.astype(dtype)


def _box_band(n, r, dtype=jnp.float32):
    """(n, n) 0/1 band matrix with taps at offsets {-r, 0, +r} (zero padding)."""
    idx = jnp.arange(n)
    d = jnp.abs(idx[:, None] - idx[None, :])
    return ((d == 0) | (d == r)).astype(dtype)


def init_params(channels, seed=0):
    """Deterministic parameter init mirroring the module's __init__ shapes."""
    key = jax.random.PRNGKey(seed)
    k1, k2, k3 = jax.random.split(key, 3)

    def conv_init(k, shape, fan_in):
        bound = 1.0 / math.sqrt(fan_in)
        return jax.random.uniform(k, shape, jnp.float32, -bound, bound)

    w1 = conv_init(k1, (32, 2 * channels), 2 * channels)   # Conv2d(2C, 32, 1)
    w2 = conv_init(k2, (32, 32), 32)                        # Conv2d(32, 32, 1)
    w3 = conv_init(k3, (channels, 32), 32)                  # Conv2d(32, C, 1)

    # AdaptiveNorm: w0*x + w1*BN(x), eval-mode BN with default buffers.
    def adaptive_norm_affine(n):
        w0, w1_ = 1.0, 0.0
        gamma = jnp.ones((n,), jnp.float32)
        beta = jnp.zeros((n,), jnp.float32)
        rm = jnp.zeros((n,), jnp.float32)
        rv = jnp.ones((n,), jnp.float32)
        eps = 1e-3
        scale = w0 + w1_ * gamma / jnp.sqrt(rv + eps)
        shift = w1_ * (beta - gamma * rm / jnp.sqrt(rv + eps))
        return scale, shift

    s1, sh1 = adaptive_norm_affine(32)
    s2, sh2 = adaptive_norm_affine(32)

    w1_folded = s1[:, None] * w1       # fold norm scale into the 1x1 weight
    return {
        "w1a": w1_folded[:, :channels],   # applied to cov_xy
        "w1b": w1_folded[:, channels:],   # applied to var_x
        "b1": sh1.reshape(32, 1),
        "w2": s2[:, None] * w2,
        "b2": sh2.reshape(32, 1),
        "w3": w3,
    }


@jax.jit
def deep_guided_filter_convgf(x_lr, x_hr, w1a, w1b, b1, w2, b2, w3):
    B, C, H, W = x_lr.shape
    _, _, Hh, Wh = x_hr.shape
    S, Sh = H * W, Hh * Wh

    # TODO(synk): `self.lr` is undefined in the provided module; identity used.
    y_lr = x_lr

    # Shape-only operators (constants under jit).
    box_mat = jnp.kron(_box_band(H, RADIUS), _box_band(W, RADIUS))   # (S, S)
    inv_n = (1.0 / box_mat.sum(axis=0)).reshape(1, S)                # 1 / box(ones)
    up_mat = jnp.kron(_interp_matrix(Hh, H), _interp_matrix(Wh, W)).T  # (S, Sh)

    # Lane-dense flattened-spatial layouts (free reshapes outside the kernel).
    x_lr_f = x_lr.reshape(B, C, S)
    y_lr_f = y_lr.reshape(B, C, S)
    x_hr_f = x_hr.reshape(B, C, Sh)

    batched = lambda last: pl.BlockSpec((1, C, last), lambda b: (b, 0, 0))
    full2d = lambda shape: pl.BlockSpec(shape, lambda b: (0, 0))

    out = pl.pallas_call(
        _dgf_kernel,
        out_shape=jax.ShapeDtypeStruct((B, C, Sh), jnp.float32),
        grid=(B,),
        in_specs=[
            batched(S),            # x_lr  (flattened spatial)
            batched(S),            # y_lr
            batched(Sh),           # x_hr
            full2d((32, C)),       # w1 half for cov_xy (norm-folded)
            full2d((32, C)),       # w1 half for var_x  (norm-folded)
            full2d((32, 1)),       # b1 (folded AdaptiveNorm shift)
            full2d((32, 32)),      # w2 (norm-folded)
            full2d((32, 1)),       # b2
            full2d((C, 32)),       # w3
            full2d((S, S)),        # box-filter operator
            full2d((1, S)),        # 1 / N
            full2d((S, Sh)),       # bilinear upsample operator
        ],
        out_specs=pl.BlockSpec((1, C, Sh), lambda b: (b, 0, 0)),
        compiler_params=pltpu.CompilerParams(
            dimension_semantics=("parallel",)),
    )(x_lr_f, y_lr_f, x_hr_f, w1a, w1b, b1, w2, b2, w3, box_mat, inv_n, up_mat)

    return out.reshape(B, C, Hh, Wh)


if __name__ == "__main__":
    B, C = 2, 3
    H = W = 16        # low-res spatial  -> S  = 256 lanes
    Hh = Wh = 32      # high-res spatial -> Sh = 1024 lanes

    key = jax.random.PRNGKey(0)
    kx, kh = jax.random.split(key)
    x_lr = jax.random.uniform(kx, (B, C, H, W), jnp.float32)
    x_hr = jax.random.uniform(kh, (B, C, Hh, Wh), jnp.float32)

    p = init_params(C, seed=0)
    out = deep_guided_filter_convgf(x_lr, x_hr,
                                    p["w1a"], p["w1b"], p["b1"],
                                    p["w2"], p["b2"], p["w3"])
    jax.block_until_ready(out)

    assert out.shape == (B, C, Hh, Wh), out.shape
    assert bool(jnp.all(jnp.isfinite(out)))
    assert bool(jnp.all((out >= 0.0) & (out <= 1.0)))
    print("KERNEL_OK")
</pallas_src>

<mosaic_0001>
module attributes {stable_mosaic.version = 11 : i64} {
  func.func @_dgf_kernel(%arg0: i32, %arg1: memref<1x3x256xf32, #tpu.memory_space<vmem>>, %arg2: memref<1x3x256xf32, #tpu.memory_space<vmem>>, %arg3: memref<1x3x1024xf32, #tpu.memory_space<vmem>>, %arg4: memref<32x3xf32, #tpu.memory_space<vmem>>, %arg5: memref<32x3xf32, #tpu.memory_space<vmem>>, %arg6: memref<32x1xf32, #tpu.memory_space<vmem>>, %arg7: memref<32x32xf32, #tpu.memory_space<vmem>>, %arg8: memref<32x1xf32, #tpu.memory_space<vmem>>, %arg9: memref<3x32xf32, #tpu.memory_space<vmem>>, %arg10: memref<256x256xf32, #tpu.memory_space<vmem>>, %arg11: memref<1x256xf32, #tpu.memory_space<vmem>>, %arg12: memref<256x1024xf32, #tpu.memory_space<vmem>>, %arg13: memref<1x3x1024xf32, #tpu.memory_space<vmem>>) attributes {dimension_semantics = [#tpu.dimension_semantics<parallel>], iteration_bounds = array<i64: 2>, scalar_prefetch = 0 : i64, scratch_operands = 0 : i64, tpu.core_type = #tpu.core_type<tc>, window_params = [{transform_indices = @transform_0, window_bounds = array<i64: 1, 3, 256>}, {transform_indices = @transform_1, window_bounds = array<i64: 1, 3, 256>}, {transform_indices = @transform_2, window_bounds = array<i64: 1, 3, 1024>}, {pipeline_mode = #tpu.pipeline_mode<synchronous>, transform_indices = @transform_3, window_bounds = array<i64: 32, 3>}, {pipeline_mode = #tpu.pipeline_mode<synchronous>, transform_indices = @transform_4, window_bounds = array<i64: 32, 3>}, {pipeline_mode = #tpu.pipeline_mode<synchronous>, transform_indices = @transform_5, window_bounds = array<i64: 32, 1>}, {pipeline_mode = #tpu.pipeline_mode<synchronous>, transform_indices = @transform_6, window_bounds = array<i64: 32, 32>}, {pipeline_mode = #tpu.pipeline_mode<synchronous>, transform_indices = @transform_7, window_bounds = array<i64: 32, 1>}, {pipeline_mode = #tpu.pipeline_mode<synchronous>, transform_indices = @transform_8, window_bounds = array<i64: 3, 32>}, {pipeline_mode = #tpu.pipeline_mode<synchronous>, transform_indices = @transform_9, window_bounds = array<i64: 256, 256>}, {pipeline_mode = #tpu.pipeline_mode<synchronous>, transform_indices = @transform_10, window_bounds = array<i64: 1, 256>}, {pipeline_mode = #tpu.pipeline_mode<synchronous>, transform_indices = @transform_11, window_bounds = array<i64: 256, 1024>}, {transform_indices = @transform_12, window_bounds = array<i64: 1, 3, 1024>}]} {
    %c0 = arith.constant 0 : index
    %c0_0 = arith.constant 0 : index
    %c0_1 = arith.constant 0 : index
    %0 = vector.load %arg1[%c0, %c0_0, %c0_1] : memref<1x3x256xf32, #tpu.memory_space<vmem>>, vector<1x3x256xf32>
    %1 = vector.shape_cast %0 : vector<1x3x256xf32> to vector<3x256xf32>
    %c0_2 = arith.constant 0 : index
    %c0_3 = arith.constant 0 : index
    %c0_4 = arith.constant 0 : index
    %2 = vector.load %arg2[%c0_2, %c0_3, %c0_4] : memref<1x3x256xf32, #tpu.memory_space<vmem>>, vector<1x3x256xf32>
    %3 = vector.shape_cast %2 : vector<1x3x256xf32> to vector<3x256xf32>
    %c0_5 = arith.constant 0 : index
    %c0_6 = arith.constant 0 : index
    %c0_7 = arith.constant 0 : index
    %4 = vector.load %arg3[%c0_5, %c0_6, %c0_7] : memref<1x3x1024xf32, #tpu.memory_space<vmem>>, vector<1x3x1024xf32>
    %5 = vector.shape_cast %4 : vector<1x3x1024xf32> to vector<3x1024xf32>
    %c0_8 = arith.constant 0 : index
    %c0_9 = arith.constant 0 : index
    %6 = vector.load %arg10[%c0_8, %c0_9] : memref<256x256xf32, #tpu.memory_space<vmem>>, vector<256x256xf32>
    %c0_10 = arith.constant 0 : index
    %c0_11 = arith.constant 0 : index
    %7 = vector.load %arg11[%c0_10, %c0_11] : memref<1x256xf32, #tpu.memory_space<vmem>>, vector<1x256xf32>
    %cst = arith.constant dense<0.000000e+00> : vector<3x256xf32>
    %8 = tpu.matmul %1, %6, %cst {dimension_numbers = #tpu.dot_dimension_numbers<[1], [0], [0], [1], [0, 0, 1, 1], [], []>} : vector<3x256xf32>, vector<256x256xf32>, vector<3x256xf32> -> vector<3x256xf32>
    %9 = vector.broadcast %7 : vector<1x256xf32> to vector<3x256xf32>
    %10 = arith.mulf %8, %9 : vector<3x256xf32>
    %cst_12 = arith.constant dense<0.000000e+00> : vector<3x256xf32>
    %11 = tpu.matmul %3, %6, %cst_12 {dimension_numbers = #tpu.dot_dimension_numbers<[1], [0], [0], [1], [0, 0, 1, 1], [], []>} : vector<3x256xf32>, vector<256x256xf32>, vector<3x256xf32> -> vector<3x256xf32>
    %12 = vector.broadcast %7 : vector<1x256xf32> to vector<3x256xf32>
    %13 = arith.mulf %11, %12 : vector<3x256xf32>
    %14 = arith.mulf %1, %3 : vector<3x256xf32>
    %cst_13 = arith.constant dense<0.000000e+00> : vector<3x256xf32>
    %15 = tpu.matmul %14, %6, %cst_13 {dimension_numbers = #tpu.dot_dimension_numbers<[1], [0], [0], [1], [0, 0, 1, 1], [], []>} : vector<3x256xf32>, vector<256x256xf32>, vector<3x256xf32> -> vector<3x256xf32>
    %16 = vector.broadcast %7 : vector<1x256xf32> to vector<3x256xf32>
    %17 = arith.mulf %15, %16 : vector<3x256xf32>
    %18 = arith.mulf %10, %13 : vector<3x256xf32>
    %19 = arith.subf %17, %18 : vector<3x256xf32>
    %20 = arith.mulf %1, %1 : vector<3x256xf32>
    %cst_14 = arith.constant dense<0.000000e+00> : vector<3x256xf32>
    %21 = tpu.matmul %20, %6, %cst_14 {dimension_numbers = #tpu.dot_dimension_numbers<[1], [0], [0], [1], [0, 0, 1, 1], [], []>} : vector<3x256xf32>, vector<256x256xf32>, vector<3x256xf32> -> vector<3x256xf32>
    %22 = vector.broadcast %7 : vector<1x256xf32> to vector<3x256xf32>
    %23 = arith.mulf %21, %22 : vector<3x256xf32>
    %24 = arith.mulf %10, %10 : vector<3x256xf32>
    %25 = arith.subf %23, %24 : vector<3x256xf32>
    %c0_15 = arith.constant 0 : index
    %c0_16 = arith.constant 0 : index
    %26 = vector.load %arg4[%c0_15, %c0_16] : memref<32x3xf32, #tpu.memory_space<vmem>>, vector<32x3xf32>
    %cst_17 = arith.constant dense<0.000000e+00> : vector<32x256xf32>
    %27 = tpu.matmul %26, %19, %cst_17 {dimension_numbers = #tpu.dot_dimension_numbers<[1], [0], [0], [1], [0, 0, 1, 1], [], []>} : vector<32x3xf32>, vector<3x256xf32>, vector<32x256xf32> -> vector<32x256xf32>
    %c0_18 = arith.constant 0 : index
    %c0_19 = arith.constant 0 : index
    %28 = vector.load %arg5[%c0_18, %c0_19] : memref<32x3xf32, #tpu.memory_space<vmem>>, vector<32x3xf32>
    %cst_20 = arith.constant dense<0.000000e+00> : vector<32x256xf32>
    %29 = tpu.matmul %28, %25, %cst_20 {dimension_numbers = #tpu.dot_dimension_numbers<[1], [0], [0], [1], [0, 0, 1, 1], [], []>} : vector<32x3xf32>, vector<3x256xf32>, vector<32x256xf32> -> vector<32x256xf32>
    %30 = arith.addf %27, %29 : vector<32x256xf32>
    %c0_21 = arith.constant 0 : index
    %c0_22 = arith.constant 0 : index
    %31 = vector.load %arg6[%c0_21, %c0_22] : memref<32x1xf32, #tpu.memory_space<vmem>>, vector<32x1xf32>
    %32 = vector.broadcast %31 : vector<32x1xf32> to vector<32x256xf32>
    %33 = arith.addf %30, %32 : vector<32x256xf32>
    %cst_23 = arith.constant 0.000000e+00 : f32
    %34 = vector.broadcast %cst_23 : f32 to vector<32x256xf32>
    %35 = arith.maximumf %33, %34 : vector<32x256xf32>
    %c0_24 = arith.constant 0 : index
    %c0_25 = arith.constant 0 : index
    %36 = vector.load %arg7[%c0_24, %c0_25] : memref<32x32xf32, #tpu.memory_space<vmem>>, vector<32x32xf32>
    %cst_26 = arith.constant dense<0.000000e+00> : vector<32x256xf32>
    %37 = tpu.matmul %36, %35, %cst_26 {dimension_numbers = #tpu.dot_dimension_numbers<[1], [0], [0], [1], [0, 0, 1, 1], [], []>} : vector<32x32xf32>, vector<32x256xf32>, vector<32x256xf32> -> vector<32x256xf32>
    %c0_27 = arith.constant 0 : index
    %c0_28 = arith.constant 0 : index
    %38 = vector.load %arg8[%c0_27, %c0_28] : memref<32x1xf32, #tpu.memory_space<vmem>>, vector<32x1xf32>
    %39 = vector.broadcast %38 : vector<32x1xf32> to vector<32x256xf32>
    %40 = arith.addf %37, %39 : vector<32x256xf32>
    %cst_29 = arith.constant 0.000000e+00 : f32
    %41 = vector.broadcast %cst_29 : f32 to vector<32x256xf32>
    %42 = arith.maximumf %40, %41 : vector<32x256xf32>
    %c0_30 = arith.constant 0 : index
    %c0_31 = arith.constant 0 : index
    %43 = vector.load %arg9[%c0_30, %c0_31] : memref<3x32xf32, #tpu.memory_space<vmem>>, vector<3x32xf32>
    %cst_32 = arith.constant dense<0.000000e+00> : vector<3x256xf32>
    %44 = tpu.matmul %43, %42, %cst_32 {dimension_numbers = #tpu.dot_dimension_numbers<[1], [0], [0], [1], [0, 0, 1, 1], [], []>} : vector<3x32xf32>, vector<32x256xf32>, vector<3x256xf32> -> vector<3x256xf32>
    %45 = arith.mulf %44, %10 : vector<3x256xf32>
    %46 = arith.subf %13, %45 : vector<3x256xf32>
    %c0_33 = arith.constant 0 : index
    %c0_34 = arith.constant 0 : index
    %47 = vector.load %arg12[%c0_33, %c0_34] : memref<256x1024xf32, #tpu.memory_space<vmem>>, vector<256x1024xf32>
    %cst_35 = arith.constant dense<0.000000e+00> : vector<3x1024xf32>
    %48 = tpu.matmul %44, %47, %cst_35 {dimension_numbers = #tpu.dot_dimension_numbers<[1], [0], [0], [1], [0, 0, 1, 1], [], []>} : vector<3x256xf32>, vector<256x1024xf32>, vector<3x1024xf32> -> vector<3x1024xf32>
    %cst_36 = arith.constant dense<0.000000e+00> : vector<3x1024xf32>
    %49 = tpu.matmul %46, %47, %cst_36 {dimension_numbers = #tpu.dot_dimension_numbers<[1], [0], [0], [1], [0, 0, 1, 1], [], []>} : vector<3x256xf32>, vector<256x1024xf32>, vector<3x1024xf32> -> vector<3x1024xf32>
    %50 = arith.mulf %48, %5 : vector<3x1024xf32>
    %51 = arith.addf %50, %49 : vector<3x1024xf32>
    %cst_37 = arith.constant 0.000000e+00 : f32
    %cst_38 = arith.constant 1.000000e+00 : f32
    %52 = vector.broadcast %cst_37 : f32 to vector<3x1024xf32>
    %53 = arith.maximumf %52, %51 : vector<3x1024xf32>
    %54 = vector.broadcast %cst_38 : f32 to vector<3x1024xf32>
    %55 = arith.minimumf %54, %53 : vector<3x1024xf32>
    %c0_39 = arith.constant 0 : index
    %c0_40 = arith.constant 0 : index
    %c0_41 = arith.constant 0 : index
    %56 = vector.load %arg13[%c0_39, %c0_40, %c0_41] : memref<1x3x1024xf32, #tpu.memory_space<vmem>>, vector<1x3x1024xf32>
    %57 = vector.shape_cast %56 : vector<1x3x1024xf32> to vector<3x1024xf32>
    %58 = vector.shape_cast %55 : vector<3x1024xf32> to vector<1x3x1024xf32>
    tpu.vector_store %arg13[%c0_39, %c0_40, %c0_41], %58 {strides = array<i32>} : memref<1x3x1024xf32, #tpu.memory_space<vmem>>, vector<1x3x1024xf32>,
    return
  }
  func.func @transform_0(%arg0: i32) -> (i32, i32, i32) {
    %c0_i32 = arith.constant 0 : i32
    %c0_i32_0 = arith.constant 0 : i32
    %c0_i32_1 = arith.constant 0 : i32
    return %arg0, %c0_i32, %c0_i32_0 : i32, i32, i32
  }
  func.func @transform_1(%arg0: i32) -> (i32, i32, i32) {
    %c0_i32 = arith.constant 0 : i32
    %c0_i32_0 = arith.constant 0 : i32
    %c0_i32_1 = arith.constant 0 : i32
    return %arg0, %c0_i32, %c0_i32_0 : i32, i32, i32
  }
  func.func @transform_2(%arg0: i32) -> (i32, i32, i32) {
    %c0_i32 = arith.constant 0 : i32
    %c0_i32_0 = arith.constant 0 : i32
    %c0_i32_1 = arith.constant 0 : i32
    return %arg0, %c0_i32, %c0_i32_0 : i32, i32, i32
  }
  func.func @transform_3(%arg0: i32) -> (i32, i32) {
    %c0_i32 = arith.constant 0 : i32
    %c0_i32_0 = arith.constant 0 : i32
    %c0_i32_1 = arith.constant 0 : i32
    return %c0_i32, %c0_i32_0 : i32, i32
  }
  func.func @transform_4(%arg0: i32) -> (i32, i32) {
    %c0_i32 = arith.constant 0 : i32
    %c0_i32_0 = arith.constant 0 : i32
    %c0_i32_1 = arith.constant 0 : i32
    return %c0_i32, %c0_i32_0 : i32, i32
  }
  func.func @transform_5(%arg0: i32) -> (i32, i32) {
    %c0_i32 = arith.constant 0 : i32
    %c0_i32_0 = arith.constant 0 : i32
    %c0_i32_1 = arith.constant 0 : i32
    return %c0_i32, %c0_i32_0 : i32, i32
  }
  func.func @transform_6(%arg0: i32) -> (i32, i32) {
    %c0_i32 = arith.constant 0 : i32
    %c0_i32_0 = arith.constant 0 : i32
    %c0_i32_1 = arith.constant 0 : i32
    return %c0_i32, %c0_i32_0 : i32, i32
  }
  func.func @transform_7(%arg0: i32) -> (i32, i32) {
    %c0_i32 = arith.constant 0 : i32
    %c0_i32_0 = arith.constant 0 : i32
    %c0_i32_1 = arith.constant 0 : i32
    return %c0_i32, %c0_i32_0 : i32, i32
  }
  func.func @transform_8(%arg0: i32) -> (i32, i32) {
    %c0_i32 = arith.constant 0 : i32
    %c0_i32_0 = arith.constant 0 : i32
    %c0_i32_1 = arith.constant 0 : i32
    return %c0_i32, %c0_i32_0 : i32, i32
  }
  func.func @transform_9(%arg0: i32) -> (i32, i32) {
    %c0_i32 = arith.constant 0 : i32
    %c0_i32_0 = arith.constant 0 : i32
    %c0_i32_1 = arith.constant 0 : i32
    return %c0_i32, %c0_i32_0 : i32, i32
  }
  func.func @transform_10(%arg0: i32) -> (i32, i32) {
    %c0_i32 = arith.constant 0 : i32
    %c0_i32_0 = arith.constant 0 : i32
    %c0_i32_1 = arith.constant 0 : i32
    return %c0_i32, %c0_i32_0 : i32, i32
  }
  func.func @transform_11(%arg0: i32) -> (i32, i32) {
    %c0_i32 = arith.constant 0 : i32
    %c0_i32_0 = arith.constant 0 : i32
    %c0_i32_1 = arith.constant 0 : i32
    return %c0_i32, %c0_i32_0 : i32, i32
  }
  func.func @transform_12(%arg0: i32) -> (i32, i32, i32) {
    %c0_i32 = arith.constant 0 : i32
    %c0_i32_0 = arith.constant 0 : i32
    %c0_i32_1 = arith.constant 0 : i32
    return %arg0, %c0_i32, %c0_i32_0 : i32, i32, i32
  }
}

</mosaic_0001>

<llo_original>
// kernel: deep_guided_filter_convgf.1
$region0: #{deep_guided_filter_convgf.1}
  #allocation0 [shape = 'u32[]', space=smem, size = 0x4, offset = 0x4, fixed_abs, tag = 'smem constant byte address 0x4 - core index']
  #allocation1 [shape = 'u32[144,128]{1,0:T(1,128)}', space=vmem, size = 0x12000, scoped, tag = 'internal scratch']
  %s0 = inlined_call_operand.vmem [shape: f32[2,3,256], index: 0, kind: input, shape index: {}, may-alias: {0,1}]
  %s1 = inlined_call_operand.vmem [shape: f32[2,3,256], index: 1, kind: input, shape index: {}, may-alias: {0,1}]
  %s2 = inlined_call_operand.vmem [shape: f32[2,3,1024], index: 2, kind: input, shape index: {}]
  %s3 = inlined_call_operand.vmem [shape: f32[32,3], index: 3, kind: input, shape index: {}]
  %s4 = inlined_call_operand.vmem [shape: f32[32,3], index: 4, kind: input, shape index: {}]
  %s5 = inlined_call_operand.vmem [shape: f32[32,1], index: 5, kind: input, shape index: {}]
  %s6 = inlined_call_operand.vmem [shape: f32[32,32], index: 6, kind: input, shape index: {}]
  %s7 = inlined_call_operand.vmem [shape: f32[32,1], index: 7, kind: input, shape index: {}]
  %s8 = inlined_call_operand.vmem [shape: f32[3,32], index: 8, kind: input, shape index: {}]
  %s9 = inlined_call_operand.vmem [shape: f32[256,256], index: 9, kind: input, shape index: {}]
  %s10 = inlined_call_operand.vmem [shape: f32[1,256], index: 10, kind: input, shape index: {}]
  %s11 = inlined_call_operand.vmem [shape: f32[256,1024], index: 11, kind: input, shape index: {}]
  %s12 = inlined_call_operand.vmem [shape: f32[2,3,1024], index: 12, kind: output, shape index: {}]
  %s13 = sld [smem:[#allocation0]]
  $region81: #{deep_guided_filter_convgf.1} parent=0
    _
  %s15 = ssub.s32 1, %s13
  %s16 = scalar_select 0, %s15, %s13
  loop: start=0, step=1, limit=4
  $region2: #{deep_guided_filter_convgf.1} parent=0 // loop_pre_header
    _
  $region3: #{deep_guided_filter_convgf.1} parent=0 // loop_header
    %s18 = sphi 0, %s22
    %p19 = scmp.ge.s32.totalorder %s18, 4
    %s28 = sphi 0, %s30
    %s31 = sphi 0, %s28
    %s32 = sphi 0, %s31
    %s48 = sphi 0, %s32
    %s54 = sphi 0, %s56
    %s57 = sphi 0, %s54
    %s58 = sphi 0, %s57
    %s74 = sphi 0, %s58
    %s80 = sphi 0, %s82
    %s83 = sphi 0, %s80
    %s84 = sphi 0, %s83
    %s100 = sphi 0, %s84
    %s104 = sphi 0, %s104
    %s106 = sphi 0, %s104
    %s107 = sphi 0, %s106
    %s121 = sphi 0, %s107
    %s125 = sphi 0, %s125
    %s127 = sphi 0, %s125
    %s128 = sphi 0, %s127
    %s142 = sphi 0, %s128
    %s146 = sphi 0, %s146
    %s148 = sphi 0, %s146
    %s149 = sphi 0, %s148
    %s163 = sphi 0, %s149
    %s167 = sphi 0, %s167
    %s169 = sphi 0, %s167
    %s170 = sphi 0, %s169
    %s184 = sphi 0, %s170
    %s188 = sphi 0, %s188
    %s190 = sphi 0, %s188
    %s191 = sphi 0, %s190
    %s205 = sphi 0, %s191
    %s209 = sphi 0, %s209
    %s211 = sphi 0, %s209
    %s212 = sphi 0, %s211
    %s226 = sphi 0, %s212
    %s230 = sphi 0, %s230
    %s232 = sphi 0, %s230
    %s233 = sphi 0, %s232
    %s247 = sphi 0, %s233
    %s251 = sphi 0, %s251
    %s253 = sphi 0, %s251
    %s254 = sphi 0, %s253
    %s268 = sphi 0, %s254
    %s272 = sphi 0, %s272
    %s274 = sphi 0, %s272
    %s275 = sphi 0, %s274
    %s289 = sphi 0, %s275
    %s295 = sphi 0, %s297
    %s298 = sphi 0, %s295
    %s299 = sphi 0, %s298
    %s315 = sphi 0, %s299
  $region4: #{deep_guided_filter_convgf.1} parent=0 // loop_header_branch
    %21 = sbr.rel (%p19) target = $region8
  $region5: #{deep_guided_filter_convgf.1} parent=0 // loop_body
    %s23 = ssub.s32 %s18, 1
    %s24 = ssub.s32 %s18, 2
    %s25 = sadd.s32 %s18, 1
    %s26 = ssub.s32 %s18, %s25
    %p27 = scmp.eq.s32.totalorder %s26, 0
    %s29 = sadd.s32 %s28, 1
    %s30 = scalar_select %p27, %s28, %s29
    %p33 = pneg %p27
    %p34 = scmp.eq.s32.totalorder %s18, 1
    %p35 = por %p33, %p34
    %p36 = scmp.ne.s32.totalorder %s28, %s31
    %p37 = scmp.eq.s32.totalorder %s18, 0
    %p38 = por %p36, %p37
    %p39 = scmp.ne.s32.totalorder %s28, %s31
    %p40 = scmp.eq.s32.totalorder %s23, 1
    %p41 = por %p39, %p40
    %p42 = scmp.ne.s32.totalorder %s31, %s32
    %p43 = scmp.eq.s32.totalorder %s23, 0
    %p44 = por %p42, %p43
    %p45 = scmp.ne.s32.totalorder %s31, %s32
    %p46 = scmp.eq.s32.totalorder %s24, 1
    %p47 = por %p45, %p46
    %p49 = scmp.ne.s32.totalorder %s32, %s48
    %p50 = scmp.eq.s32.totalorder %s24, 0
    %p51 = por %p49, %p50
    %s52 = ssub.s32 %s18, %s25
    %p53 = scmp.eq.s32.totalorder %s52, 0
    %s55 = sadd.s32 %s54, 1
    %s56 = scalar_select %p53, %s54, %s55
    %p59 = pneg %p53
    %p60 = scmp.eq.s32.totalorder %s18, 1
    %p61 = por %p59, %p60
    %p62 = scmp.ne.s32.totalorder %s54, %s57
    %p63 = scmp.eq.s32.totalorder %s18, 0
    %p64 = por %p62, %p63
    %p65 = scmp.ne.s32.totalorder %s54, %s57
    %p66 = scmp.eq.s32.totalorder %s23, 1
    %p67 = por %p65, %p66
    %p68 = scmp.ne.s32.totalorder %s57, %s58
    %p69 = scmp.eq.s32.totalorder %s23, 0
    %p70 = por %p68, %p69
    %p71 = scmp.ne.s32.totalorder %s57, %s58
    %p72 = scmp.eq.s32.totalorder %s24, 1
    %p73 = por %p71, %p72
    %p75 = scmp.ne.s32.totalorder %s58, %s74
    %p76 = scmp.eq.s32.totalorder %s24, 0
    %p77 = por %p75, %p76
    %s78 = ssub.s32 %s18, %s25
    %p79 = scmp.eq.s32.totalorder %s78, 0
    %s81 = sadd.s32 %s80, 1
    %s82 = scalar_select %p79, %s80, %s81
    %p85 = pneg %p79
    %p86 = scmp.eq.s32.totalorder %s18, 1
    %p87 = por %p85, %p86
    %p88 = scmp.ne.s32.totalorder %s80, %s83
    %p89 = scmp.eq.s32.totalorder %s18, 0
    %p90 = por %p88, %p89
    %p91 = scmp.ne.s32.totalorder %s80, %s83
    %p92 = scmp.eq.s32.totalorder %s23, 1
    %p93 = por %p91, %p92
    %p94 = scmp.ne.s32.totalorder %s83, %s84
    %p95 = scmp.eq.s32.totalorder %s23, 0
    %p96 = por %p94, %p95
    %p97 = scmp.ne.s32.totalorder %s83, %s84
    %p98 = scmp.eq.s32.totalorder %s24, 1
    %p99 = por %p97, %p98
    %p101 = scmp.ne.s32.totalorder %s84, %s100
    %p102 = scmp.eq.s32.totalorder %s24, 0
    %p103 = por %p101, %p102
    %s105 = sadd.s32 %s104, 1
    %p108 = scmp.eq.s32.totalorder %s18, 1
    %p109 = scmp.ne.s32.totalorder %s104, %s106
    %p110 = scmp.eq.s32.totalorder %s18, 0
    %p111 = por %p109, %p110
    %p112 = scmp.ne.s32.totalorder %s104, %s106
    %p113 = scmp.eq.s32.totalorder %s23, 1
    %p114 = por %p112, %p113
    %p115 = scmp.ne.s32.totalorder %s106, %s107
    %p116 = scmp.eq.s32.totalorder %s23, 0
    %p117 = por %p115, %p116
    %p118 = scmp.ne.s32.totalorder %s106, %s107
    %p119 = scmp.eq.s32.totalorder %s24, 1
    %p120 = por %p118, %p119
    %p122 = scmp.ne.s32.totalorder %s107, %s121
    %p123 = scmp.eq.s32.totalorder %s24, 0
    %p124 = por %p122, %p123
    %s126 = sadd.s32 %s125, 1
    %p129 = scmp.eq.s32.totalorder %s18, 1
    %p130 = scmp.ne.s32.totalorder %s125, %s127
    %p131 = scmp.eq.s32.totalorder %s18, 0
    %p132 = por %p130, %p131
    %p133 = scmp.ne.s32.totalorder %s125, %s127
    %p134 = scmp.eq.s32.totalorder %s23, 1
    %p135 = por %p133, %p134
    %p136 = scmp.ne.s32.totalorder %s127, %s128
    %p137 = scmp.eq.s32.totalorder %s23, 0
    %p138 = por %p136, %p137
    %p139 = scmp.ne.s32.totalorder %s127, %s128
    %p140 = scmp.eq.s32.totalorder %s24, 1
    %p141 = por %p139, %p140
    %p143 = scmp.ne.s32.totalorder %s128, %s142
    %p144 = scmp.eq.s32.totalorder %s24, 0
    %p145 = por %p143, %p144
    %s147 = sadd.s32 %s146, 1
    %p150 = scmp.eq.s32.totalorder %s18, 1
    %p151 = scmp.ne.s32.totalorder %s146, %s148
    %p152 = scmp.eq.s32.totalorder %s18, 0
    %p153 = por %p151, %p152
    %p154 = scmp.ne.s32.totalorder %s146, %s148
    %p155 = scmp.eq.s32.totalorder %s23, 1
    %p156 = por %p154, %p155
    %p157 = scmp.ne.s32.totalorder %s148, %s149
    %p158 = scmp.eq.s32.totalorder %s23, 0
    %p159 = por %p157, %p158
    %p160 = scmp.ne.s32.totalorder %s148, %s149
    %p161 = scmp.eq.s32.totalorder %s24, 1
    %p162 = por %p160, %p161
    %p164 = scmp.ne.s32.totalorder %s149, %s163
    %p165 = scmp.eq.s32.totalorder %s24, 0
    %p166 = por %p164, %p165
    %s168 = sadd.s32 %s167, 1
    %p171 = scmp.eq.s32.totalorder %s18, 1
    %p172 = scmp.ne.s32.totalorder %s167, %s169
    %p173 = scmp.eq.s32.totalorder %s18, 0
    %p174 = por %p172, %p173
    %p175 = scmp.ne.s32.totalorder %s167, %s169
    %p176 = scmp.eq.s32.totalorder %s23, 1
    %p177 = por %p175, %p176
    %p178 = scmp.ne.s32.totalorder %s169, %s170
    %p179 = scmp.eq.s32.totalorder %s23, 0
    %p180 = por %p178, %p179
    %p181 = scmp.ne.s32.totalorder %s169, %s170
    %p182 = scmp.eq.s32.totalorder %s24, 1
    %p183 = por %p181, %p182
    %p185 = scmp.ne.s32.totalorder %s170, %s184
    %p186 = scmp.eq.s32.totalorder %s24, 0
    %p187 = por %p185, %p186
    %s189 = sadd.s32 %s188, 1
    %p192 = scmp.eq.s32.totalorder %s18, 1
    %p193 = scmp.ne.s32.totalorder %s188, %s190
    %p194 = scmp.eq.s32.totalorder %s18, 0
    %p195 = por %p193, %p194
    %p196 = scmp.ne.s32.totalorder %s188, %s190
    %p197 = scmp.eq.s32.totalorder %s23, 1
    %p198 = por %p196, %p197
    %p199 = scmp.ne.s32.totalorder %s190, %s191
    %p200 = scmp.eq.s32.totalorder %s23, 0
    %p201 = por %p199, %p200
    %p202 = scmp.ne.s32.totalorder %s190, %s191
    %p203 = scmp.eq.s32.totalorder %s24, 1
    %p204 = por %p202, %p203
    %p206 = scmp.ne.s32.totalorder %s191, %s205
    %p207 = scmp.eq.s32.totalorder %s24, 0
    %p208 = por %p206, %p207
    %s210 = sadd.s32 %s209, 1
    %p213 = scmp.eq.s32.totalorder %s18, 1
    %p214 = scmp.ne.s32.totalorder %s209, %s211
    %p215 = scmp.eq.s32.totalorder %s18, 0
    %p216 = por %p214, %p215
    %p217 = scmp.ne.s32.totalorder %s209, %s211
    %p218 = scmp.eq.s32.totalorder %s23, 1
    %p219 = por %p217, %p218
    %p220 = scmp.ne.s32.totalorder %s211, %s212
    %p221 = scmp.eq.s32.totalorder %s23, 0
    %p222 = por %p220, %p221
    %p223 = scmp.ne.s32.totalorder %s211, %s212
    %p224 = scmp.eq.s32.totalorder %s24, 1
    %p225 = por %p223, %p224
    %p227 = scmp.ne.s32.totalorder %s212, %s226
    %p228 = scmp.eq.s32.totalorder %s24, 0
    %p229 = por %p227, %p228
    %s231 = sadd.s32 %s230, 1
    %p234 = scmp.eq.s32.totalorder %s18, 1
    %p235 = scmp.ne.s32.totalorder %s230, %s232
    %p236 = scmp.eq.s32.totalorder %s18, 0
    %p237 = por %p235, %p236
    %p238 = scmp.ne.s32.totalorder %s230, %s232
    %p239 = scmp.eq.s32.totalorder %s23, 1
    %p240 = por %p238, %p239
    %p241 = scmp.ne.s32.totalorder %s232, %s233
    %p242 = scmp.eq.s32.totalorder %s23, 0
    %p243 = por %p241, %p242
    %p244 = scmp.ne.s32.totalorder %s232, %s233
    %p245 = scmp.eq.s32.totalorder %s24, 1
    %p246 = por %p244, %p245
    %p248 = scmp.ne.s32.totalorder %s233, %s247
    %p249 = scmp.eq.s32.totalorder %s24, 0
    %p250 = por %p248, %p249
    %s252 = sadd.s32 %s251, 1
    %p255 = scmp.eq.s32.totalorder %s18, 1
    %p256 = scmp.ne.s32.totalorder %s251, %s253
    %p257 = scmp.eq.s32.totalorder %s18, 0
    %p258 = por %p256, %p257
    %p259 = scmp.ne.s32.totalorder %s251, %s253
    %p260 = scmp.eq.s32.totalorder %s23, 1
    %p261 = por %p259, %p260
    %p262 = scmp.ne.s32.totalorder %s253, %s254
    %p263 = scmp.eq.s32.totalorder %s23, 0
    %p264 = por %p262, %p263
    %p265 = scmp.ne.s32.totalorder %s253, %s254
    %p266 = scmp.eq.s32.totalorder %s24, 1
    %p267 = por %p265, %p266
    %p269 = scmp.ne.s32.totalorder %s254, %s268
    %p270 = scmp.eq.s32.totalorder %s24, 0
    %p271 = por %p269, %p270
    %s273 = sadd.s32 %s272, 1
    %p276 = scmp.eq.s32.totalorder %s18, 1
    %p277 = scmp.ne.s32.totalorder %s272, %s274
    %p278 = scmp.eq.s32.totalorder %s18, 0
    %p279 = por %p277, %p278
    %p280 = scmp.ne.s32.totalorder %s272, %s274
    %p281 = scmp.eq.s32.totalorder %s23, 1
    %p282 = por %p280, %p281
    %p283 = scmp.ne.s32.totalorder %s274, %s275
    %p284 = scmp.eq.s32.totalorder %s23, 0
    %p285 = por %p283, %p284
    %p286 = scmp.ne.s32.totalorder %s274, %s275
    %p287 = scmp.eq.s32.totalorder %s24, 1
    %p288 = por %p286, %p287
    %p290 = scmp.ne.s32.totalorder %s275, %s289
    %p291 = scmp.eq.s32.totalorder %s24, 0
    %p292 = por %p290, %p291
    %s293 = ssub.s32 %s18, %s25
    %p294 = scmp.eq.s32.totalorder %s293, 0
    %s296 = sadd.s32 %s295, 1
    %s297 = scalar_select %p294, %s295, %s296
    %p300 = pneg %p294
    %p301 = scmp.eq.s32.totalorder %s18, 1
    %p302 = por %p300, %p301
    %p303 = scmp.ne.s32.totalorder %s295, %s298
    %p304 = scmp.eq.s32.totalorder %s18, 0
    %p305 = por %p303, %p304
    %p306 = scmp.ne.s32.totalorder %s295, %s298
    %p307 = scmp.eq.s32.totalorder %s23, 1
    %p308 = por %p306, %p307
    %p309 = scmp.ne.s32.totalorder %s298, %s299
    %p310 = scmp.eq.s32.totalorder %s23, 0
    %p311 = por %p309, %p310
    %p312 = scmp.ne.s32.totalorder %s298, %s299
    %p313 = scmp.eq.s32.totalorder %s24, 1
    %p314 = por %p312, %p313
    %p316 = scmp.ne.s32.totalorder %s299, %s315
    %p317 = scmp.eq.s32.totalorder %s24, 0
    %p318 = por %p316, %p317
    %p319 = scmp.le.s32.totalorder 1, %s18
    %p320 = scmp.lt.s32.totalorder %s18, 3
    %p321 = pnand %p319, %p320
    %p322 = pneg %p321
    // Predicated region
    $region9: #{deep_guided_filter_convgf.1} parent=5 // pred_check
      _
    $region10: #{deep_guided_filter_convgf.1} parent=5 // pred_check_branch
      %324 = sbr.rel (%p321) target = $region12
    $region11: #{deep_guided_filter_convgf.1} parent=5 // pred_region
      %s325 = ssub.s32 %s18, 1
      // Predicated region
      $region13: #{deep_guided_filter_convgf.1} parent=11 // pred_check
        %p326 = pneg %p117
      $region14: #{deep_guided_filter_convgf.1} parent=11 // pred_check_branch
        %328 = sbr.rel (%p326) target = $region16
      $region15: #{deep_guided_filter_convgf.1} parent=11 // pred_region
        _
      $region16: #{deep_guided_filter_convgf.1} parent=11 // pred_fallthru
        _
      // Predicated region
      $region17: #{deep_guided_filter_convgf.1} parent=11 // pred_check
        %p329 = pneg %p138
      $region18: #{deep_guided_filter_convgf.1} parent=11 // pred_check_branch
        %331 = sbr.rel (%p329) target = $region20
      $region19: #{deep_guided_filter_convgf.1} parent=11 // pred_region
        _
      $region20: #{deep_guided_filter_convgf.1} parent=11 // pred_fallthru
        _
      // Predicated region
      $region21: #{deep_guided_filter_convgf.1} parent=11 // pred_check
        %p332 = pneg %p159
      $region22: #{deep_guided_filter_convgf.1} parent=11 // pred_check_branch
        %334 = sbr.rel (%p332) target = $region24
      $region23: #{deep_guided_filter_convgf.1} parent=11 // pred_region
        _
      $region24: #{deep_guided_filter_convgf.1} parent=11 // pred_fallthru
        _
      // Predicated region
      $region25: #{deep_guided_filter_convgf.1} parent=11 // pred_check
        %p335 = pneg %p180
      $region26: #{deep_guided_filter_convgf.1} parent=11 // pred_check_branch
        %337 = sbr.rel (%p335) target = $region28
      $region27: #{deep_guided_filter_convgf.1} parent=11 // pred_region
        _
      $region28: #{deep_guided_filter_convgf.1} parent=11 // pred_fallthru
        _
      // Predicated region
      $region29: #{deep_guided_filter_convgf.1} parent=11 // pred_check
        %p338 = pneg %p201
      $region30: #{deep_guided_filter_convgf.1} parent=11 // pred_check_branch
        %340 = sbr.rel (%p338) target = $region32
      $region31: #{deep_guided_filter_convgf.1} parent=11 // pred_region
        _
      $region32: #{deep_guided_filter_convgf.1} parent=11 // pred_fallthru
        _
      // Predicated region
      $region33: #{deep_guided_filter_convgf.1} parent=11 // pred_check
        %p341 = pneg %p222
      $region34: #{deep_guided_filter_convgf.1} parent=11 // pred_check_branch
        %343 = sbr.rel (%p341) target = $region36
      $region35: #{deep_guided_filter_convgf.1} parent=11 // pred_region
        _
      $region36: #{deep_guided_filter_convgf.1} parent=11 // pred_fallthru
        _
      // Predicated region
      $region37: #{deep_guided_filter_convgf.1} parent=11 // pred_check
        %p344 = pneg %p243
      $region38: #{deep_guided_filter_convgf.1} parent=11 // pred_check_branch
        %346 = sbr.rel (%p344) target = $region40
      $region39: #{deep_guided_filter_convgf.1} parent=11 // pred_region
        _
      $region40: #{deep_guided_filter_convgf.1} parent=11 // pred_fallthru
        _
      // Predicated region
      $region41: #{deep_guided_filter_convgf.1} parent=11 // pred_check
        %p347 = pneg %p264
      $region42: #{deep_guided_filter_convgf.1} parent=11 // pred_check_branch
        %349 = sbr.rel (%p347) target = $region44
      $region43: #{deep_guided_filter_convgf.1} parent=11 // pred_region
        _
      $region44: #{deep_guided_filter_convgf.1} parent=11 // pred_fallthru
        _
      // Predicated region
      $region45: #{deep_guided_filter_convgf.1} parent=11 // pred_check
        %p350 = pneg %p285
      $region46: #{deep_guided_filter_convgf.1} parent=11 // pred_check_branch
        %352 = sbr.rel (%p350) target = $region48
      $region47: #{deep_guided_filter_convgf.1} parent=11 // pred_region
        _
      $region48: #{deep_guided_filter_convgf.1} parent=11 // pred_fallthru
        _
    $region12: #{deep_guided_filter_convgf.1} parent=5 // pred_fallthru
      _
    %p353 = scmp.lt.s32.totalorder %s18, 2
    // Predicated region
    $region49: #{deep_guided_filter_convgf.1} parent=5 // pred_check
      %p354 = pneg %p353
    $region50: #{deep_guided_filter_convgf.1} parent=5 // pred_check_branch
      %356 = sbr.rel (%p354) target = $region52
    $region51: #{deep_guided_filter_convgf.1} parent=5 // pred_region
      // Predicated region
      $region53: #{deep_guided_filter_convgf.1} parent=51 // pred_check
        %p357 = pneg %p38
      $region54: #{deep_guided_filter_convgf.1} parent=51 // pred_check_branch
        %359 = sbr.rel (%p357) target = $region56
      $region55: #{deep_guided_filter_convgf.1} parent=51 // pred_region
        %p360 = scmp.lt.s32.totalorder %s18, 1
        %s361 = scalar_select %p360, %s18, 1
        %s362 = smul.addr %s361, 2
        %s363 = smul.addr %s362, 4
        %s364 = scalar_lea.vmem %s0, %s363
      $region56: #{deep_guided_filter_convgf.1} parent=51 // pred_fallthru
        _
      // Predicated region
      $region57: #{deep_guided_filter_convgf.1} parent=51 // pred_check
        %p365 = pneg %p64
      $region58: #{deep_guided_filter_convgf.1} parent=51 // pred_check_branch
        %367 = sbr.rel (%p365) target = $region60
      $region59: #{deep_guided_filter_convgf.1} parent=51 // pred_region
        %p368 = scmp.lt.s32.totalorder %s18, 1
        %s369 = scalar_select %p368, %s18, 1
        %s370 = smul.addr %s369, 2
        %s371 = smul.addr %s370, 4
        %s372 = scalar_lea.vmem %s1, %s371
      $region60: #{deep_guided_filter_convgf.1} parent=51 // pred_fallthru
        _
      // Predicated region
      $region61: #{deep_guided_filter_convgf.1} parent=51 // pred_check
        %p373 = pneg %p90
      $region62: #{deep_guided_filter_convgf.1} parent=51 // pred_check_branch
        %375 = sbr.rel (%p373) target = $region64
      $region63: #{deep_guided_filter_convgf.1} parent=51 // pred_region
        %p376 = scmp.lt.s32.totalorder %s18, 1
        %s377 = scalar_select %p376, %s18, 1
        %s378 = smul.addr %s377, 8
        %s379 = smul.addr %s378, 4
        %s380 = scalar_lea.vmem %s2, %s379
      $region64: #{deep_guided_filter_convgf.1} parent=51 // pred_fallthru
        _
    $region52: #{deep_guided_filter_convgf.1} parent=5 // pred_fallthru
      _
    %p381 = scmp.le.s32.totalorder 1, %s18
    %p382 = scmp.lt.s32.totalorder %s18, 3
    %p383 = pnand %p381, %p382
    %p384 = pneg %p383
    // Predicated region
    $region65: #{deep_guided_filter_convgf.1} parent=5 // pred_check
      _
    $region66: #{deep_guided_filter_convgf.1} parent=5 // pred_check_branch
      %386 = sbr.rel (%p383) target = $region68
    $region67: #{deep_guided_filter_convgf.1} parent=5 // pred_region
      %s387 = ssub.s32 %s18, 1
      %p388 = scmp.lt.s32.totalorder %s23, 1
      %s389 = scalar_select %p388, %s23, 1
      %s390 = smul.addr %s389, 2
      %s391 = smul.addr %s390, 4
      %s392 = scalar_lea.vmem %s0, %s391
      %p393 = pneg %p44
      %p394 = pneg %p41
      %p395 = scmp.lt.s32.totalorder %s23, 1
      %s396 = scalar_select %p395, %s23, 1
      %s397 = smul.addr %s396, 2
      %s398 = smul.addr %s397, 4
      %s399 = scalar_lea.vmem %s1, %s398
      %p400 = pneg %p70
      %p401 = pneg %p67
      %p402 = scmp.lt.s32.totalorder %s23, 1
      %s403 = scalar_select %p402, %s23, 1
      %s404 = smul.addr %s403, 8
      %s405 = smul.addr %s404, 4
      %s406 = scalar_lea.vmem %s2, %s405
      %p407 = pneg %p96
      %p408 = pneg %p93
      %p409 = pneg %p117
      %p410 = pneg %p114
      %p411 = pneg %p138
      %p412 = pneg %p135
      %p413 = pneg %p159
      %p414 = pneg %p156
      %p415 = pneg %p180
      %p416 = pneg %p177
      %p417 = pneg %p201
      %p418 = pneg %p198
      %p419 = pneg %p222
      %p420 = pneg %p219
      %p421 = pneg %p243
      %p422 = pneg %p240
      %p423 = pneg %p264
      %p424 = pneg %p261
      %p425 = pneg %p285
      %p426 = pneg %p282
      %p427 = pneg %p311
      %p428 = pneg %p308
      %p429 = scmp.lt.s32.totalorder %s23, 1
      %s430 = scalar_select %p429, %s23, 1
      %s431 = smul.addr %s430, 8
      %s432 = smul.addr %s431, 4
      %s433 = scalar_lea.vmem %s12, %s432
      %p434 = scmp.lt.s32.totalorder %s23, 1
      %s435 = scalar_select %p434, %s23, 1
      %s436 = smul.addr %s435, 2
      %s437 = smul.addr %s436, 4
      %s438 = scalar_lea.vmem %s0, %s437
      %p439 = scmp.lt.s32.totalorder %s23, 1
      %s440 = scalar_select %p439, %s23, 1
      %s441 = smul.addr %s440, 2
      %s442 = smul.addr %s441, 4
      %s443 = scalar_lea.vmem %s1, %s442
      %p444 = scmp.lt.s32.totalorder %s23, 1
      %s445 = scalar_select %p444, %s23, 1
      %s446 = smul.addr %s445, 8
      %s447 = smul.addr %s446, 4
      %s448 = scalar_lea.vmem %s2, %s447
      %p449 = scmp.lt.s32.totalorder %s23, 1
      %s450 = scalar_select %p449, %s23, 1
      %s451 = smul.addr %s450, 8
      %s452 = smul.addr %s451, 4
      %s453 = scalar_lea.vmem %s12, %s452
      %v454 = vld [vmem:[%s438] sm:$0x77]
      %v455 = vld [vmem:[%s443] sm:$0x77]
      %v456 = vld [vmem:[%s448] sm:$0x77]
      %v457 = vld [vmem:[%s448 + $0x8] sm:$0x77]
      %v458 = vld [vmem:[%s448 + $0x10] sm:$0x77]
      %v459 = vld [vmem:[%s448 + $0x18] sm:$0x77]
      %v460 = vld [vmem:[%s9] sm:$0xff]
      %v461 = vld [vmem:[%s9 + $0x8] sm:$0xff]
      %v462 = vld [vmem:[%s9 + $0x10] sm:$0xff]
      %v463 = vld [vmem:[%s9 + $0x18] sm:$0xff]
      %v464 = vld [vmem:[%s9 + $0x20] sm:$0xff]
      %v465 = vld [vmem:[%s9 + $0x28] sm:$0xff]
      %v466 = vld [vmem:[%s9 + $0x30] sm:$0xff]
      %v467 = vld [vmem:[%s9 + $0x38] sm:$0xff]
      %v468 = vld [vmem:[%s9 + $0x40] sm:$0xff]
      %v469 = vld [vmem:[%s9 + $0x48] sm:$0xff]
      %v470 = vld [vmem:[%s9 + $0x50] sm:$0xff]
      %v471 = vld [vmem:[%s9 + $0x58] sm:$0xff]
      %v472 = vld [vmem:[%s9 + $0x60] sm:$0xff]
      %v473 = vld [vmem:[%s9 + $0x68] sm:$0xff]
      %v474 = vld [vmem:[%s9 + $0x70] sm:$0xff]
      %v475 = vld [vmem:[%s9 + $0x78] sm:$0xff]
      %v476 = vld [vmem:[%s9 + $0x80] sm:$0xff]
      %v477 = vld [vmem:[%s9 + $0x88] sm:$0xff]
      %v478 = vld [vmem:[%s9 + $0x90] sm:$0xff]
      %v479 = vld [vmem:[%s9 + $0x98] sm:$0xff]
      %v480 = vld [vmem:[%s9 + $0xa0] sm:$0xff]
      %v481 = vld [vmem:[%s9 + $0xa8] sm:$0xff]
      %v482 = vld [vmem:[%s9 + $0xb0] sm:$0xff]
      %v483 = vld [vmem:[%s9 + $0xb8] sm:$0xff]
      %v484 = vld [vmem:[%s9 + $0xc0] sm:$0xff]
      %v485 = vld [vmem:[%s9 + $0xc8] sm:$0xff]
      %v486 = vld [vmem:[%s9 + $0xd0] sm:$0xff]
      %v487 = vld [vmem:[%s9 + $0xd8] sm:$0xff]
      %v488 = vld [vmem:[%s9 + $0xe0] sm:$0xff]
      %v489 = vld [vmem:[%s9 + $0xe8] sm:$0xff]
      %v490 = vld [vmem:[%s9 + $0xf0] sm:$0xff]
      %v491 = vld [vmem:[%s9 + $0xf8] sm:$0xff]
      %v492 = vld [vmem:[%s9 + $0x100] sm:$0xff]
      %v493 = vld [vmem:[%s9 + $0x108] sm:$0xff]
      %v494 = vld [vmem:[%s9 + $0x110] sm:$0xff]
      %v495 = vld [vmem:[%s9 + $0x118] sm:$0xff]
      %v496 = vld [vmem:[%s9 + $0x120] sm:$0xff]
      %v497 = vld [vmem:[%s9 + $0x128] sm:$0xff]
      %v498 = vld [vmem:[%s9 + $0x130] sm:$0xff]
      %v499 = vld [vmem:[%s9 + $0x138] sm:$0xff]
      %v500 = vld [vmem:[%s9 + $0x140] sm:$0xff]
      %v501 = vld [vmem:[%s9 + $0x148] sm:$0xff]
      %v502 = vld [vmem:[%s9 + $0x150] sm:$0xff]
      %v503 = vld [vmem:[%s9 + $0x158] sm:$0xff]
      %v504 = vld [vmem:[%s9 + $0x160] sm:$0xff]
      %v505 = vld [vmem:[%s9 + $0x168] sm:$0xff]
      %v506 = vld [vmem:[%s9 + $0x170] sm:$0xff]
      %v507 = vld [vmem:[%s9 + $0x178] sm:$0xff]
      %v508 = vld [vmem:[%s9 + $0x180] sm:$0xff]
      %v509 = vld [vmem:[%s9 + $0x188] sm:$0xff]
      %v510 = vld [vmem:[%s9 + $0x190] sm:$0xff]
      %v511 = vld [vmem:[%s9 + $0x198] sm:$0xff]
      %v512 = vld [vmem:[%s9 + $0x1a0] sm:$0xff]
      %v513 = vld [vmem:[%s9 + $0x1a8] sm:$0xff]
      %v514 = vld [vmem:[%s9 + $0x1b0] sm:$0xff]
      %v515 = vld [vmem:[%s9 + $0x1b8] sm:$0xff]
      %v516 = vld [vmem:[%s9 + $0x1c0] sm:$0xff]
      %v517 = vld [vmem:[%s9 + $0x1c8] sm:$0xff]
      %v518 = vld [vmem:[%s9 + $0x1d0] sm:$0xff]
      %v519 = vld [vmem:[%s9 + $0x1d8] sm:$0xff]
      %v520 = vld [vmem:[%s9 + $0x1e0] sm:$0xff]
      %v521 = vld [vmem:[%s9 + $0x1e8] sm:$0xff]
      %v522 = vld [vmem:[%s9 + $0x1f0] sm:$0xff]
      %v523 = vld [vmem:[%s9 + $0x1f8] sm:$0xff]
      %v524 = vld [vmem:[%s10] sm:$0x3]
      %v526 = vcombine.high %v454, %v454
      %528 = vmatprep.subr.mxu0 %v461
      %529 = vmatpush1.msra.mxu0 %v460
      %530 = vmatprep.subr.mxu0 %v463
      %531 = vmatpush1.msra.mxu0 %v462
      %532 = vmatprep.subr.mxu0 %v465
      %533 = vmatpush1.msra.mxu0 %v464
      %534 = vmatprep.subr.mxu0 %v467
      %535 = vmatpush1.msra.mxu0 %v466
      %536 = vmatprep.subr.mxu0 %v469
      %537 = vmatpush1.msra.mxu0 %v468
      %538 = vmatprep.subr.mxu0 %v471
      %539 = vmatpush1.msra.mxu0 %v470
      %540 = vmatprep.subr.mxu0 %v473
      %541 = vmatpush1.msra.mxu0 %v472
      %542 = vmatprep.subr.mxu0 %v475
      %543 = vmatpush1.msra.mxu0 %v474
      %544 = vmatprep.subr.mxu0 %v477
      %545 = vmatpush1.msra.mxu0 %v476
      %546 = vmatprep.subr.mxu0 %v479
      %547 = vmatpush1.msra.mxu0 %v478
      %548 = vmatprep.subr.mxu0 %v481
      %549 = vmatpush1.msra.mxu0 %v480
      %550 = vmatprep.subr.mxu0 %v483
      %551 = vmatpush1.msra.mxu0 %v482
      %552 = vmatprep.subr.mxu0 %v485
      %553 = vmatpush1.msra.mxu0 %v484
      %554 = vmatprep.subr.mxu0 %v487
      %555 = vmatpush1.msra.mxu0 %v486
      %556 = vmatprep.subr.mxu0 %v489
      %557 = vmatpush1.msra.mxu0 %v488
      %558 = vmatprep.subr.mxu0 %v491
      %559 = vmatpush1.msra.mxu0 %v490
      %560 = vmatprep.subr.mxu0 %v493
      %561 = vmatpush1.msra.mxu0 %v492
      %562 = vmatprep.subr.mxu0 %v495
      %563 = vmatpush1.msra.mxu0 %v494
      %564 = vmatprep.subr.mxu0 %v497
      %565 = vmatpush1.msra.mxu0 %v496
      %566 = vmatprep.subr.mxu0 %v499
      %567 = vmatpush1.msra.mxu0 %v498
      %568 = vmatprep.subr.mxu0 %v501
      %569 = vmatpush1.msra.mxu0 %v500
      %570 = vmatprep.subr.mxu0 %v503
      %571 = vmatpush1.msra.mxu0 %v502
      %572 = vmatprep.subr.mxu0 %v505
      %573 = vmatpush1.msra.mxu0 %v504
      %574 = vmatprep.subr.mxu0 %v507
      %575 = vmatpush1.msra.mxu0 %v506
      %576 = vmatprep.subr.mxu0 %v509
      %577 = vmatpush1.msra.mxu0 %v508
      %578 = vmatprep.subr.mxu0 %v511
      %579 = vmatpush1.msra.mxu0 %v510
      %580 = vmatprep.subr.mxu0 %v513
      %581 = vmatpush1.msra.mxu0 %v512
      %582 = vmatprep.subr.mxu0 %v515
      %583 = vmatpush1.msra.mxu0 %v514
      %584 = vmatprep.subr.mxu0 %v517
      %585 = vmatpush1.msra.mxu0 %v516
      %586 = vmatprep.subr.mxu0 %v519
      %587 = vmatpush1.msra.mxu0 %v518
      %588 = vmatprep.subr.mxu0 %v521
      %589 = vmatpush1.msra.mxu0 %v520
      %590 = vmatprep.subr.mxu0 %v523
      %591 = vmatpush1.msra.mxu0 %v522
      %592 = vmatprep.mubr.f32.mxu0 %v526
      %593 = vmatmul.mubr.f32.gmra.mrb[0].mxu0 %v454
      %v594 = vpop.f32.mrb[0].mxu0
      %v595 = vadd.f32 0.0, %v594
      %v596 = vpop.f32.mrb[0].mxu0
      %v597 = vadd.f32 0.0, %v596
      %598 = vdwg.mxu0
      %v600 = vlaneseq
      %v601 = vshrl.u32 %v600, 7
      %v602 = vsub.s32 0, %v601
      %v603 = vrot.slane %v524, %v602
      %v604 = vlaneseq
      %v605 = vshrl.u32 %v604, 7
      %v606 = vsub.s32 1, %v605
      %v607 = vrot.slane %v524, %v606
      %v610 = vmul.f32 %v595, %v603
      %v611 = vmul.f32 %v597, %v607
      %v613 = vcombine.high %v455, %v455
      %615 = vmatprep.subr.mxu0 %v461
      %616 = vmatpush1.msra.mxu0 %v460
      %617 = vmatprep.subr.mxu0 %v463
      %618 = vmatpush1.msra.mxu0 %v462
      %619 = vmatprep.subr.mxu0 %v465
      %620 = vmatpush1.msra.mxu0 %v464
      %621 = vmatprep.subr.mxu0 %v467
      %622 = vmatpush1.msra.mxu0 %v466
      %623 = vmatprep.subr.mxu0 %v469
      %624 = vmatpush1.msra.mxu0 %v468
      %625 = vmatprep.subr.mxu0 %v471
      %626 = vmatpush1.msra.mxu0 %v470
      %627 = vmatprep.subr.mxu0 %v473
      %628 = vmatpush1.msra.mxu0 %v472
      %629 = vmatprep.subr.mxu0 %v475
      %630 = vmatpush1.msra.mxu0 %v474
      %631 = vmatprep.subr.mxu0 %v477
      %632 = vmatpush1.msra.mxu0 %v476
      %633 = vmatprep.subr.mxu0 %v479
      %634 = vmatpush1.msra.mxu0 %v478
      %635 = vmatprep.subr.mxu0 %v481
      %636 = vmatpush1.msra.mxu0 %v480
      %637 = vmatprep.subr.mxu0 %v483
      %638 = vmatpush1.msra.mxu0 %v482
      %639 = vmatprep.subr.mxu0 %v485
      %640 = vmatpush1.msra.mxu0 %v484
      %641 = vmatprep.subr.mxu0 %v487
      %642 = vmatpush1.msra.mxu0 %v486
      %643 = vmatprep.subr.mxu0 %v489
      %644 = vmatpush1.msra.mxu0 %v488
      %645 = vmatprep.subr.mxu0 %v491
      %646 = vmatpush1.msra.mxu0 %v490
      %647 = vmatprep.subr.mxu0 %v493
      %648 = vmatpush1.msra.mxu0 %v492
      %649 = vmatprep.subr.mxu0 %v495
      %650 = vmatpush1.msra.mxu0 %v494
      %651 = vmatprep.subr.mxu0 %v497
      %652 = vmatpush1.msra.mxu0 %v496
      %653 = vmatprep.subr.mxu0 %v499
      %654 = vmatpush1.msra.mxu0 %v498
      %655 = vmatprep.subr.mxu0 %v501
      %656 = vmatpush1.msra.mxu0 %v500
      %657 = vmatprep.subr.mxu0 %v503
      %658 = vmatpush1.msra.mxu0 %v502
      %659 = vmatprep.subr.mxu0 %v505
      %660 = vmatpush1.msra.mxu0 %v504
      %661 = vmatprep.subr.mxu0 %v507
      %662 = vmatpush1.msra.mxu0 %v506
      %663 = vmatprep.subr.mxu0 %v509
      %664 = vmatpush1.msra.mxu0 %v508
      %665 = vmatprep.subr.mxu0 %v511
      %666 = vmatpush1.msra.mxu0 %v510
      %667 = vmatprep.subr.mxu0 %v513
      %668 = vmatpush1.msra.mxu0 %v512
      %669 = vmatprep.subr.mxu0 %v515
      %670 = vmatpush1.msra.mxu0 %v514
      %671 = vmatprep.subr.mxu0 %v517
      %672 = vmatpush1.msra.mxu0 %v516
      %673 = vmatprep.subr.mxu0 %v519
      %674 = vmatpush1.msra.mxu0 %v518
      %675 = vmatprep.subr.mxu0 %v521
      %676 = vmatpush1.msra.mxu0 %v520
      %677 = vmatprep.subr.mxu0 %v523
      %678 = vmatpush1.msra.mxu0 %v522
      %679 = vmatprep.mubr.f32.mxu0 %v613
      %680 = vmatmul.mubr.f32.gmra.mrb[0].mxu0 %v455
      %v681 = vpop.f32.mrb[0].mxu0
      %v682 = vadd.f32 0.0, %v681
      %v683 = vpop.f32.mrb[0].mxu0
      %v684 = vadd.f32 0.0, %v683
      %685 = vdwg.mxu0
      %v686 = vmul.f32 %v682, %v603
      %v687 = vmul.f32 %v684, %v607
      %v688 = vmul.f32 %v454, %v455
      %v690 = vcombine.high %v688, %v688
      %692 = vmatprep.subr.mxu0 %v461
      %693 = vmatpush1.msra.mxu0 %v460
      %694 = vmatprep.subr.mxu0 %v463
      %695 = vmatpush1.msra.mxu0 %v462
      %696 = vmatprep.subr.mxu0 %v465
      %697 = vmatpush1.msra.mxu0 %v464
      %698 = vmatprep.subr.mxu0 %v467
      %699 = vmatpush1.msra.mxu0 %v466
      %700 = vmatprep.subr.mxu0 %v469
      %701 = vmatpush1.msra.mxu0 %v468
      %702 = vmatprep.subr.mxu0 %v471
      %703 = vmatpush1.msra.mxu0 %v470
      %704 = vmatprep.subr.mxu0 %v473
      %705 = vmatpush1.msra.mxu0 %v472
      %706 = vmatprep.subr.mxu0 %v475
      %707 = vmatpush1.msra.mxu0 %v474
      %708 = vmatprep.subr.mxu0 %v477
      %709 = vmatpush1.msra.mxu0 %v476
      %710 = vmatprep.subr.mxu0 %v479
      %711 = vmatpush1.msra.mxu0 %v478
      %712 = vmatprep.subr.mxu0 %v481
      %713 = vmatpush1.msra.mxu0 %v480
      %714 = vmatprep.subr.mxu0 %v483
      %715 = vmatpush1.msra.mxu0 %v482
      %716 = vmatprep.subr.mxu0 %v485
      %717 = vmatpush1.msra.mxu0 %v484
      %718 = vmatprep.subr.mxu0 %v487
      %719 = vmatpush1.msra.mxu0 %v486
      %720 = vmatprep.subr.mxu0 %v489
      %721 = vmatpush1.msra.mxu0 %v488
      %722 = vmatprep.subr.mxu0 %v491
      %723 = vmatpush1.msra.mxu0 %v490
      %724 = vmatprep.subr.mxu0 %v493
      %725 = vmatpush1.msra.mxu0 %v492
      %726 = vmatprep.subr.mxu0 %v495
      %727 = vmatpush1.msra.mxu0 %v494
      %728 = vmatprep.subr.mxu0 %v497
      %729 = vmatpush1.msra.mxu0 %v496
      %730 = vmatprep.subr.mxu0 %v499
      %731 = vmatpush1.msra.mxu0 %v498
      %732 = vmatprep.subr.mxu0 %v501
      %733 = vmatpush1.msra.mxu0 %v500
      %734 = vmatprep.subr.mxu0 %v503
      %735 = vmatpush1.msra.mxu0 %v502
      %736 = vmatprep.subr.mxu0 %v505
      %737 = vmatpush1.msra.mxu0 %v504
      %738 = vmatprep.subr.mxu0 %v507
      %739 = vmatpush1.msra.mxu0 %v506
      %740 = vmatprep.subr.mxu0 %v509
      %741 = vmatpush1.msra.mxu0 %v508
      %742 = vmatprep.subr.mxu0 %v511
      %743 = vmatpush1.msra.mxu0 %v510
      %744 = vmatprep.subr.mxu0 %v513
      %745 = vmatpush1.msra.mxu0 %v512
      %746 = vmatprep.subr.mxu0 %v515
      %747 = vmatpush1.msra.mxu0 %v514
      %748 = vmatprep.subr.mxu0 %v517
      %749 = vmatpush1.msra.mxu0 %v516
      %750 = vmatprep.subr.mxu0 %v519
      %751 = vmatpush1.msra.mxu0 %v518
      %752 = vmatprep.subr.mxu0 %v521
      %753 = vmatpush1.msra.mxu0 %v520
      %754 = vmatprep.subr.mxu0 %v523
      %755 = vmatpush1.msra.mxu0 %v522
      %756 = vmatprep.mubr.f32.mxu0 %v690
      %757 = vmatmul.mubr.f32.gmra.mrb[0].mxu0 %v688
      %v758 = vpop.f32.mrb[0].mxu0
      %v759 = vadd.f32 0.0, %v758
      %v760 = vpop.f32.mrb[0].mxu0
      %v761 = vadd.f32 0.0, %v760
      %762 = vdwg.mxu0
      %v763 = vmul.f32 %v759, %v603
      %v764 = vmul.f32 %v761, %v607
      %v765 = vmul.f32 %v610, %v686
      %v766 = vmul.f32 %v611, %v687
      %v767 = vsub.f32 %v763, %v765
      %v768 = vsub.f32 %v764, %v766
      %v769 = vmul.f32 %v454, %v454
      %v771 = vcombine.high %v769, %v769
      %773 = vmatprep.subr.mxu0 %v461
      %774 = vmatpush1.msra.mxu0 %v460
      %775 = vmatprep.subr.mxu0 %v463
      %776 = vmatpush1.msra.mxu0 %v462
      %777 = vmatprep.subr.mxu0 %v465
      %778 = vmatpush1.msra.mxu0 %v464
      %779 = vmatprep.subr.mxu0 %v467
      %780 = vmatpush1.msra.mxu0 %v466
      %781 = vmatprep.subr.mxu0 %v469
      %782 = vmatpush1.msra.mxu0 %v468
      %783 = vmatprep.subr.mxu0 %v471
      %784 = vmatpush1.msra.mxu0 %v470
      %785 = vmatprep.subr.mxu0 %v473
      %786 = vmatpush1.msra.mxu0 %v472
      %787 = vmatprep.subr.mxu0 %v475
      %788 = vmatpush1.msra.mxu0 %v474
      %789 = vmatprep.subr.mxu0 %v477
      %790 = vmatpush1.msra.mxu0 %v476
      %791 = vmatprep.subr.mxu0 %v479
      %792 = vmatpush1.msra.mxu0 %v478
      %793 = vmatprep.subr.mxu0 %v481
      %794 = vmatpush1.msra.mxu0 %v480
      %795 = vmatprep.subr.mxu0 %v483
      %796 = vmatpush1.msra.mxu0 %v482
      %797 = vmatprep.subr.mxu0 %v485
      %798 = vmatpush1.msra.mxu0 %v484
      %799 = vmatprep.subr.mxu0 %v487
      %800 = vmatpush1.msra.mxu0 %v486
      %801 = vmatprep.subr.mxu0 %v489
      %802 = vmatpush1.msra.mxu0 %v488
      %803 = vmatprep.subr.mxu0 %v491
      %804 = vmatpush1.msra.mxu0 %v490
      %805 = vmatprep.subr.mxu0 %v493
      %806 = vmatpush1.msra.mxu0 %v492
      %807 = vmatprep.subr.mxu0 %v495
      %808 = vmatpush1.msra.mxu0 %v494
      %809 = vmatprep.subr.mxu0 %v497
      %810 = vmatpush1.msra.mxu0 %v496
      %811 = vmatprep.subr.mxu0 %v499
      %812 = vmatpush1.msra.mxu0 %v498
      %813 = vmatprep.subr.mxu0 %v501
      %814 = vmatpush1.msra.mxu0 %v500
      %815 = vmatprep.subr.mxu0 %v503
      %816 = vmatpush1.msra.mxu0 %v502
      %817 = vmatprep.subr.mxu0 %v505
      %818 = vmatpush1.msra.mxu0 %v504
      %819 = vmatprep.subr.mxu0 %v507
      %820 = vmatpush1.msra.mxu0 %v506
      %821 = vmatprep.subr.mxu0 %v509
      %822 = vmatpush1.msra.mxu0 %v508
      %823 = vmatprep.subr.mxu0 %v511
      %824 = vmatpush1.msra.mxu0 %v510
      %825 = vmatprep.subr.mxu0 %v513
      %826 = vmatpush1.msra.mxu0 %v512
      %827 = vmatprep.subr.mxu0 %v515
      %828 = vmatpush1.msra.mxu0 %v514
      %829 = vmatprep.subr.mxu0 %v517
      %830 = vmatpush1.msra.mxu0 %v516
      %831 = vmatprep.subr.mxu0 %v519
      %832 = vmatpush1.msra.mxu0 %v518
      %833 = vmatprep.subr.mxu0 %v521
      %834 = vmatpush1.msra.mxu0 %v520
      %835 = vmatprep.subr.mxu0 %v523
      %836 = vmatpush1.msra.mxu0 %v522
      %837 = vmatprep.mubr.f32.mxu0 %v771
      %838 = vmatmul.mubr.f32.gmra.mrb[0].mxu0 %v769
      %v839 = vpop.f32.mrb[0].mxu0
      %v840 = vadd.f32 0.0, %v839
      %v841 = vpop.f32.mrb[0].mxu0
      %v842 = vadd.f32 0.0, %v841
      %843 = vdwg.mxu0
      %v844 = vmul.f32 %v840, %v603
      %v845 = vmul.f32 %v842, %v607
      %v846 = vmul.f32 %v610, %v610
      %v847 = vmul.f32 %v611, %v611
      %v848 = vsub.f32 %v844, %v846
      %v849 = vsub.f32 %v845, %v847
      %v850 = vld [vmem:[%s3] sm:$0xff]
      %v851 = vld [vmem:[%s3 + $0x8] sm:$0xff]
      %v852 = vld [vmem:[%s3 + $0x10] sm:$0xff]
      %v853 = vld [vmem:[%s3 + $0x18] sm:$0xff]
      %v854 = vld [vmem:[%s4] sm:$0xff]
      %v855 = vld [vmem:[%s4 + $0x8] sm:$0xff]
      %v856 = vld [vmem:[%s4 + $0x10] sm:$0xff]
      %v857 = vld [vmem:[%s4 + $0x18] sm:$0xff]
      %vm858 = vcmask 23552
      %v860 = vsel %vm858, %v854, 0
      %v863 = vsel %vm858, %v855, 0
      %v866 = vsel %vm858, %v856, 0
      %v869 = vsel %vm858, %v857, 0
      %vm871 = vcmask 1042432
      %v873 = vsel %vm871, %v848, 0
      %v876 = vsel %vm871, %v849, 0
      %878 = vmatprep.subr.mxu0 %v876
      %879 = vmatpush1.msra.mxu0 %v873
      %880 = vmatprep.subr.mxu0 0.0
      %881 = vmatpush1.msra.mxu0 0.0
      %882 = vmatprep.subr.mxu0 0.0
      %883 = vmatpush1.msra.mxu0 0.0
      %884 = vmatprep.subr.mxu0 0.0
      %885 = vmatpush1.msra.mxu0 0.0
      %886 = vmatprep.subr.mxu0 0.0
      %887 = vmatpush1.msra.mxu0 0.0
      %888 = vmatprep.subr.mxu0 0.0
      %889 = vmatpush1.msra.mxu0 0.0
      %890 = vmatprep.subr.mxu0 0.0
      %891 = vmatpush1.msra.mxu0 0.0
      %892 = vmatprep.subr.mxu0 0.0
      %893 = vmatpush1.msra.mxu0 0.0
      %894 = vmatprep.subr.mxu0 0.0
      %895 = vmatpush1.msra.mxu0 0.0
      %896 = vmatprep.subr.mxu0 0.0
      %897 = vmatpush1.msra.mxu0 0.0
      %898 = vmatprep.subr.mxu0 0.0
      %899 = vmatpush1.msra.mxu0 0.0
      %900 = vmatprep.subr.mxu0 0.0
      %901 = vmatpush1.msra.mxu0 0.0
      %902 = vmatprep.subr.mxu0 0.0
      %903 = vmatpush1.msra.mxu0 0.0
      %904 = vmatprep.subr.mxu0 0.0
      %905 = vmatpush1.msra.mxu0 0.0
      %906 = vmatprep.subr.mxu0 0.0
      %907 = vmatpush1.msra.mxu0 0.0
      %908 = vmatprep.subr.mxu0 0.0
      %909 = vmatpush1.msra.mxu0 0.0
      %910 = vmatprep.subr.mxu0 0.0
      %911 = vmatpush1.msra.mxu0 0.0
      %912 = vmatprep.subr.mxu0 0.0
      %913 = vmatpush1.msra.mxu0 0.0
      %914 = vmatprep.subr.mxu0 0.0
      %915 = vmatpush1.msra.mxu0 0.0
      %916 = vmatprep.subr.mxu0 0.0
      %917 = vmatpush1.msra.mxu0 0.0
      %918 = vmatprep.subr.mxu0 0.0
      %919 = vmatpush1.msra.mxu0 0.0
      %920 = vmatprep.subr.mxu0 0.0
      %921 = vmatpush1.msra.mxu0 0.0
      %922 = vmatprep.subr.mxu0 0.0
      %923 = vmatpush1.msra.mxu0 0.0
      %924 = vmatprep.subr.mxu0 0.0
      %925 = vmatpush1.msra.mxu0 0.0
      %926 = vmatprep.subr.mxu0 0.0
      %927 = vmatpush1.msra.mxu0 0.0
      %928 = vmatprep.subr.mxu0 0.0
      %929 = vmatpush1.msra.mxu0 0.0
      %930 = vmatprep.subr.mxu0 0.0
      %931 = vmatpush1.msra.mxu0 0.0
      %932 = vmatprep.subr.mxu0 0.0
      %933 = vmatpush1.msra.mxu0 0.0
      %934 = vmatprep.subr.mxu0 0.0
      %935 = vmatpush1.msra.mxu0 0.0
      %936 = vmatprep.subr.mxu0 0.0
      %937 = vmatpush1.msra.mxu0 0.0
      %938 = vmatprep.subr.mxu0 0.0
      %939 = vmatpush1.msra.mxu0 0.0
      %940 = vmatprep.subr.mxu0 0.0
      %941 = vmatpush1.msra.mxu0 0.0
      %942 = vmatprep.mubr.f32.mxu0 0.0
      %943 = vmatmul.mubr.f32.gmra.mrb[0].mxu0 %v860
      %v944 = vpop.f32.mrb[0].mxu0
      %v945 = vadd.f32 0.0, %v944
      %v946 = vpop.f32.mrb[0].mxu0
      %v947 = vadd.f32 0.0, %v946
      %948 = vmatprep.mubr.f32.mxu0 0.0
      %949 = vmatmul.mubr.f32.gmra.mrb[0].mxu0 %v863
      %v950 = vpop.f32.mrb[0].mxu0
      %v951 = vadd.f32 0.0, %v950
      %v952 = vpop.f32.mrb[0].mxu0
      %v953 = vadd.f32 0.0, %v952
      %954 = vmatprep.mubr.f32.mxu0 0.0
      %955 = vmatmul.mubr.f32.gmra.mrb[0].mxu0 %v866
      %v956 = vpop.f32.mrb[0].mxu0
      %v957 = vadd.f32 0.0, %v956
      %v958 = vpop.f32.mrb[0].mxu0
      %v959 = vadd.f32 0.0, %v958
      %960 = vmatprep.mubr.f32.mxu0 0.0
      %961 = vmatmul.mubr.f32.gmra.mrb[0].mxu0 %v869
      %v962 = vpop.f32.mrb[0].mxu0
      %v963 = vadd.f32 0.0, %v962
      %v964 = vpop.f32.mrb[0].mxu0
      %v965 = vadd.f32 0.0, %v964
      %966 = vdwg.mxu0
      %v968 = vsel %vm858, %v850, 0
      %v971 = vsel %vm858, %v851, 0
      %v974 = vsel %vm858, %v852, 0
      %v977 = vsel %vm858, %v853, 0
      %v980 = vsel %vm871, %v767, 0
      %v983 = vsel %vm871, %v768, 0
      %985 = vmatprep.subr.mxu0 %v983
      %986 = vmatpush1.msra.mxu0 %v980
      %987 = vmatprep.subr.mxu0 0.0
      %988 = vmatpush1.msra.mxu0 0.0
      %989 = vmatprep.subr.mxu0 0.0
      %990 = vmatpush1.msra.mxu0 0.0
      %991 = vmatprep.subr.mxu0 0.0
      %992 = vmatpush1.msra.mxu0 0.0
      %993 = vmatprep.subr.mxu0 0.0
      %994 = vmatpush1.msra.mxu0 0.0
      %995 = vmatprep.subr.mxu0 0.0
      %996 = vmatpush1.msra.mxu0 0.0
      %997 = vmatprep.subr.mxu0 0.0
      %998 = vmatpush1.msra.mxu0 0.0
      %999 = vmatprep.subr.mxu0 0.0
      %1000 = vmatpush1.msra.mxu0 0.0
      %1001 = vmatprep.subr.mxu0 0.0
      %1002 = vmatpush1.msra.mxu0 0.0
      %1003 = vmatprep.subr.mxu0 0.0
      %1004 = vmatpush1.msra.mxu0 0.0
      %1005 = vmatprep.subr.mxu0 0.0
      %1006 = vmatpush1.msra.mxu0 0.0
      %1007 = vmatprep.subr.mxu0 0.0
      %1008 = vmatpush1.msra.mxu0 0.0
      %1009 = vmatprep.subr.mxu0 0.0
      %1010 = vmatpush1.msra.mxu0 0.0
      %1011 = vmatprep.subr.mxu0 0.0
      %1012 = vmatpush1.msra.mxu0 0.0
      %1013 = vmatprep.subr.mxu0 0.0
      %1014 = vmatpush1.msra.mxu0 0.0
      %1015 = vmatprep.subr.mxu0 0.0
      %1016 = vmatpush1.msra.mxu0 0.0
      %1017 = vmatprep.subr.mxu0 0.0
      %1018 = vmatpush1.msra.mxu0 0.0
      %1019 = vmatprep.subr.mxu0 0.0
      %1020 = vmatpush1.msra.mxu0 0.0
      %1021 = vmatprep.subr.mxu0 0.0
      %1022 = vmatpush1.msra.mxu0 0.0
      %1023 = vmatprep.subr.mxu0 0.0
      %1024 = vmatpush1.msra.mxu0 0.0
      %1025 = vmatprep.subr.mxu0 0.0
      %1026 = vmatpush1.msra.mxu0 0.0
      %1027 = vmatprep.subr.mxu0 0.0
      %1028 = vmatpush1.msra.mxu0 0.0
      %1029 = vmatprep.subr.mxu0 0.0
      %1030 = vmatpush1.msra.mxu0 0.0
      %1031 = vmatprep.subr.mxu0 0.0
      %1032 = vmatpush1.msra.mxu0 0.0
      %1033 = vmatprep.subr.mxu0 0.0
      %1034 = vmatpush1.msra.mxu0 0.0
      %1035 = vmatprep.subr.mxu0 0.0
      %1036 = vmatpush1.msra.mxu0 0.0
      %1037 = vmatprep.subr.mxu0 0.0
      %1038 = vmatpush1.msra.mxu0 0.0
      %1039 = vmatprep.subr.mxu0 0.0
      %1040 = vmatpush1.msra.mxu0 0.0
      %1041 = vmatprep.subr.mxu0 0.0
      %1042 = vmatpush1.msra.mxu0 0.0
      %1043 = vmatprep.subr.mxu0 0.0
      %1044 = vmatpush1.msra.mxu0 0.0
      %1045 = vmatprep.subr.mxu0 0.0
      %1046 = vmatpush1.msra.mxu0 0.0
      %1047 = vmatprep.subr.mxu0 0.0
      %1048 = vmatpush1.msra.mxu0 0.0
      %1049 = vmatprep.mubr.f32.mxu0 0.0
      %1050 = vmatmul.mubr.f32.gmra.mrb[0].mxu0 %v968
      %v1051 = vpop.f32.mrb[0].mxu0
      %v1052 = vadd.f32 %v945, %v1051
      %v1053 = vpop.f32.mrb[0].mxu0
      %v1054 = vadd.f32 %v947, %v1053
      %1055 = vmatprep.mubr.f32.mxu0 0.0
      %1056 = vmatmul.mubr.f32.gmra.mrb[0].mxu0 %v971
      %v1057 = vpop.f32.mrb[0].mxu0
      %v1058 = vadd.f32 %v951, %v1057
      %v1059 = vpop.f32.mrb[0].mxu0
      %v1060 = vadd.f32 %v953, %v1059
      %1061 = vmatprep.mubr.f32.mxu0 0.0
      %1062 = vmatmul.mubr.f32.gmra.mrb[0].mxu0 %v974
      %v1063 = vpop.f32.mrb[0].mxu0
      %v1064 = vadd.f32 %v957, %v1063
      %v1065 = vpop.f32.mrb[0].mxu0
      %v1066 = vadd.f32 %v959, %v1065
      %1067 = vmatprep.mubr.f32.mxu0 0.0
      %1068 = vmatmul.mubr.f32.gmra.mrb[0].mxu0 %v977
      %v1069 = vpop.f32.mrb[0].mxu0
      %v1070 = vadd.f32 %v963, %v1069
      %v1071 = vpop.f32.mrb[0].mxu0
      %v1072 = vadd.f32 %v965, %v1071
      %1073 = vdwg.mxu0
      %v1074 = vld [vmem:[%s5] sm:$0xff]
      %v1075 = vld [vmem:[%s5 + $0x8] sm:$0xff]
      %v1076 = vld [vmem:[%s5 + $0x10] sm:$0xff]
      %v1077 = vld [vmem:[%s5 + $0x18] sm:$0xff]
      %1079 = vset.pattern.permute.xlu0 0
      %1080 = vperm.xlu0 %1079, %v1074
      %v1081 = vpop.permute.xlu0 %1080
      %1084 = vset.pattern.permute.xlu0 0
      %1085 = vperm.xlu0 %1084, %v1075
      %v1086 = vpop.permute.xlu0 %1085
      %1089 = vset.pattern.permute.xlu0 0
      %1090 = vperm.xlu0 %1089, %v1076
      %v1091 = vpop.permute.xlu0 %1090
      %1094 = vset.pattern.permute.xlu0 0
      %1095 = vperm.xlu0 %1094, %v1077
      %v1096 = vpop.permute.xlu0 %1095
      %v1098 = vadd.f32 %v1052, %v1081
      %v1099 = vadd.f32 %v1054, %v1081
      %v1100 = vadd.f32 %v1058, %v1086
      %v1101 = vadd.f32 %v1060, %v1086
      %v1102 = vadd.f32 %v1064, %v1091
      %v1103 = vadd.f32 %v1066, %v1091
      %v1104 = vadd.f32 %v1070, %v1096
      %v1105 = vadd.f32 %v1072, %v1096
      %v1106 = vmax.f32 %v1098, 0.0
      %v1107 = vmax.f32 %v1099, 0.0
      %v1108 = vmax.f32 %v1100, 0.0
      %v1109 = vmax.f32 %v1101, 0.0
      %v1110 = vmax.f32 %v1102, 0.0
      %v1111 = vmax.f32 %v1103, 0.0
      %v1112 = vmax.f32 %v1104, 0.0
      %v1113 = vmax.f32 %v1105, 0.0
      %v1114 = vld [vmem:[%s6] sm:$0xff]
      %v1115 = vld [vmem:[%s6 + $0x8] sm:$0xff]
      %v1116 = vld [vmem:[%s6 + $0x10] sm:$0xff]
      %v1117 = vld [vmem:[%s6 + $0x18] sm:$0xff]
      %v1118 = vld [vmem:[%s7] sm:$0xff]
      %v1119 = vld [vmem:[%s7 + $0x8] sm:$0xff]
      %v1120 = vld [vmem:[%s7 + $0x10] sm:$0xff]
      %v1121 = vld [vmem:[%s7 + $0x18] sm:$0xff]
      %1123 = vset.pattern.permute.xlu0 0
      %1124 = vperm.xlu0 %1123, %v1118
      %v1125 = vpop.permute.xlu0 %1124
      %1128 = vset.pattern.permute.xlu0 0
      %1129 = vperm.xlu0 %1128, %v1119
      %v1130 = vpop.permute.xlu0 %1129
      %1133 = vset.pattern.permute.xlu0 0
      %1134 = vperm.xlu0 %1133, %v1120
      %v1135 = vpop.permute.xlu0 %1134
      %1138 = vset.pattern.permute.xlu0 0
      %1139 = vperm.xlu0 %1138, %v1121
      %v1140 = vpop.permute.xlu0 %1139
      %vm1142 = vcmask 261120
      %v1144 = vsel %vm1142, %v1114, 0
      %v1147 = vsel %vm1142, %v1115, 0
      %v1150 = vsel %vm1142, %v1116, 0
      %v1153 = vsel %vm1142, %v1117, 0
      %1155 = vmatprep.subr.mxu0 %v1107
      %1156 = vmatpush1.msra.mxu0 %v1106
      %1157 = vmatprep.subr.mxu0 %v1109
      %1158 = vmatpush1.msra.mxu0 %v1108
      %1159 = vmatprep.subr.mxu0 %v1111
      %1160 = vmatpush1.msra.mxu0 %v1110
      %1161 = vmatprep.subr.mxu0 %v1113
      %1162 = vmatpush1.msra.mxu0 %v1112
      %1163 = vmatprep.subr.mxu0 0.0
      %1164 = vmatpush1.msra.mxu0 0.0
      %1165 = vmatprep.subr.mxu0 0.0
      %1166 = vmatpush1.msra.mxu0 0.0
      %1167 = vmatprep.subr.mxu0 0.0
      %1168 = vmatpush1.msra.mxu0 0.0
      %1169 = vmatprep.subr.mxu0 0.0
      %1170 = vmatpush1.msra.mxu0 0.0
      %1171 = vmatprep.subr.mxu0 0.0
      %1172 = vmatpush1.msra.mxu0 0.0
      %1173 = vmatprep.subr.mxu0 0.0
      %1174 = vmatpush1.msra.mxu0 0.0
      %1175 = vmatprep.subr.mxu0 0.0
      %1176 = vmatpush1.msra.mxu0 0.0
      %1177 = vmatprep.subr.mxu0 0.0
      %1178 = vmatpush1.msra.mxu0 0.0
      %1179 = vmatprep.subr.mxu0 0.0
      %1180 = vmatpush1.msra.mxu0 0.0
      %1181 = vmatprep.subr.mxu0 0.0
      %1182 = vmatpush1.msra.mxu0 0.0
      %1183 = vmatprep.subr.mxu0 0.0
      %1184 = vmatpush1.msra.mxu0 0.0
      %1185 = vmatprep.subr.mxu0 0.0
      %1186 = vmatpush1.msra.mxu0 0.0
      %1187 = vmatprep.subr.mxu0 0.0
      %1188 = vmatpush1.msra.mxu0 0.0
      %1189 = vmatprep.subr.mxu0 0.0
      %1190 = vmatpush1.msra.mxu0 0.0
      %1191 = vmatprep.subr.mxu0 0.0
      %1192 = vmatpush1.msra.mxu0 0.0
      %1193 = vmatprep.subr.mxu0 0.0
      %1194 = vmatpush1.msra.mxu0 0.0
      %1195 = vmatprep.subr.mxu0 0.0
      %1196 = vmatpush1.msra.mxu0 0.0
      %1197 = vmatprep.subr.mxu0 0.0
      %1198 = vmatpush1.msra.mxu0 0.0
      %1199 = vmatprep.subr.mxu0 0.0
      %1200 = vmatpush1.msra.mxu0 0.0
      %1201 = vmatprep.subr.mxu0 0.0
      %1202 = vmatpush1.msra.mxu0 0.0
      %1203 = vmatprep.subr.mxu0 0.0
      %1204 = vmatpush1.msra.mxu0 0.0
      %1205 = vmatprep.subr.mxu0 0.0
      %1206 = vmatpush1.msra.mxu0 0.0
      %1207 = vmatprep.subr.mxu0 0.0
      %1208 = vmatpush1.msra.mxu0 0.0
      %1209 = vmatprep.subr.mxu0 0.0
      %1210 = vmatpush1.msra.mxu0 0.0
      %1211 = vmatprep.subr.mxu0 0.0
      %1212 = vmatpush1.msra.mxu0 0.0
      %1213 = vmatprep.subr.mxu0 0.0
      %1214 = vmatpush1.msra.mxu0 0.0
      %1215 = vmatprep.subr.mxu0 0.0
      %1216 = vmatpush1.msra.mxu0 0.0
      %1217 = vmatprep.subr.mxu0 0.0
      %1218 = vmatpush1.msra.mxu0 0.0
      %1219 = vmatprep.mubr.f32.mxu0 0.0
      %1220 = vmatmul.mubr.f32.gmra.mrb[0].mxu0 %v1144
      %v1221 = vpop.f32.mrb[0].mxu0
      %v1222 = vadd.f32 %v1125, %v1221
      %v1223 = vpop.f32.mrb[0].mxu0
      %v1224 = vadd.f32 %v1125, %v1223
      %1225 = vmatprep.mubr.f32.mxu0 0.0
      %1226 = vmatmul.mubr.f32.gmra.mrb[0].mxu0 %v1147
      %v1227 = vpop.f32.mrb[0].mxu0
      %v1228 = vadd.f32 %v1130, %v1227
      %v1229 = vpop.f32.mrb[0].mxu0
      %v1230 = vadd.f32 %v1130, %v1229
      %1231 = vmatprep.mubr.f32.mxu0 0.0
      %1232 = vmatmul.mubr.f32.gmra.mrb[0].mxu0 %v1150
      %v1233 = vpop.f32.mrb[0].mxu0
      %v1234 = vadd.f32 %v1135, %v1233
      %v1235 = vpop.f32.mrb[0].mxu0
      %v1236 = vadd.f32 %v1135, %v1235
      %1237 = vmatprep.mubr.f32.mxu0 0.0
      %1238 = vmatmul.mubr.f32.gmra.mrb[0].mxu0 %v1153
      %v1239 = vpop.f32.mrb[0].mxu0
      %v1240 = vadd.f32 %v1140, %v1239
      %v1241 = vpop.f32.mrb[0].mxu0
      %v1242 = vadd.f32 %v1140, %v1241
      %1243 = vdwg.mxu0
      %v1244 = vmax.f32 %v1222, 0.0
      %v1245 = vmax.f32 %v1224, 0.0
      %v1246 = vmax.f32 %v1228, 0.0
      %v1247 = vmax.f32 %v1230, 0.0
      %v1248 = vmax.f32 %v1234, 0.0
      %v1249 = vmax.f32 %v1236, 0.0
      %v1250 = vmax.f32 %v1240, 0.0
      %v1251 = vmax.f32 %v1242, 0.0
      %v1252 = vld [vmem:[%s8] sm:$0x7]
      %v1254 = vsel %vm1142, %v1252, 0
      %1256 = vmatprep.subr.mxu0 %v1245
      %1257 = vmatpush1.msra.mxu0 %v1244
      %1258 = vmatprep.subr.mxu0 %v1247
      %1259 = vmatpush1.msra.mxu0 %v1246
      %1260 = vmatprep.subr.mxu0 %v1249
      %1261 = vmatpush1.msra.mxu0 %v1248
      %1262 = vmatprep.subr.mxu0 %v1251
      %1263 = vmatpush1.msra.mxu0 %v1250
      %1264 = vmatprep.subr.mxu0 0.0
      %1265 = vmatpush1.msra.mxu0 0.0
      %1266 = vmatprep.subr.mxu0 0.0
      %1267 = vmatpush1.msra.mxu0 0.0
      %1268 = vmatprep.subr.mxu0 0.0
      %1269 = vmatpush1.msra.mxu0 0.0
      %1270 = vmatprep.subr.mxu0 0.0
      %1271 = vmatpush1.msra.mxu0 0.0
      %1272 = vmatprep.subr.mxu0 0.0
      %1273 = vmatpush1.msra.mxu0 0.0
      %1274 = vmatprep.subr.mxu0 0.0
      %1275 = vmatpush1.msra.mxu0 0.0
      %1276 = vmatprep.subr.mxu0 0.0
      %1277 = vmatpush1.msra.mxu0 0.0
      %1278 = vmatprep.subr.mxu0 0.0
      %1279 = vmatpush1.msra.mxu0 0.0
      %1280 = vmatprep.subr.mxu0 0.0
      %1281 = vmatpush1.msra.mxu0 0.0
      %1282 = vmatprep.subr.mxu0 0.0
      %1283 = vmatpush1.msra.mxu0 0.0
      %1284 = vmatprep.subr.mxu0 0.0
      %1285 = vmatpush1.msra.mxu0 0.0
      %1286 = vmatprep.subr.mxu0 0.0
      %1287 = vmatpush1.msra.mxu0 0.0
      %1288 = vmatprep.subr.mxu0 0.0
      %1289 = vmatpush1.msra.mxu0 0.0
      %1290 = vmatprep.subr.mxu0 0.0
      %1291 = vmatpush1.msra.mxu0 0.0
      %1292 = vmatprep.subr.mxu0 0.0
      %1293 = vmatpush1.msra.mxu0 0.0
      %1294 = vmatprep.subr.mxu0 0.0
      %1295 = vmatpush1.msra.mxu0 0.0
      %1296 = vmatprep.subr.mxu0 0.0
      %1297 = vmatpush1.msra.mxu0 0.0
      %1298 = vmatprep.subr.mxu0 0.0
      %1299 = vmatpush1.msra.mxu0 0.0
      %1300 = vmatprep.subr.mxu0 0.0
      %1301 = vmatpush1.msra.mxu0 0.0
      %1302 = vmatprep.subr.mxu0 0.0
      %1303 = vmatpush1.msra.mxu0 0.0
      %1304 = vmatprep.subr.mxu0 0.0
      %1305 = vmatpush1.msra.mxu0 0.0
      %1306 = vmatprep.subr.mxu0 0.0
      %1307 = vmatpush1.msra.mxu0 0.0
      %1308 = vmatprep.subr.mxu0 0.0
      %1309 = vmatpush1.msra.mxu0 0.0
      %1310 = vmatprep.subr.mxu0 0.0
      %1311 = vmatpush1.msra.mxu0 0.0
      %1312 = vmatprep.subr.mxu0 0.0
      %1313 = vmatpush1.msra.mxu0 0.0
      %1314 = vmatprep.subr.mxu0 0.0
      %1315 = vmatpush1.msra.mxu0 0.0
      %1316 = vmatprep.subr.mxu0 0.0
      %1317 = vmatpush1.msra.mxu0 0.0
      %1318 = vmatprep.subr.mxu0 0.0
      %1319 = vmatpush1.msra.mxu0 0.0
      %1320 = vmatprep.mubr.f32.mxu0 0.0
      %1321 = vmatmul.mubr.f32.gmra.mrb[0].mxu0 %v1254
      %v1322 = vpop.f32.mrb[0].mxu0
      %v1323 = vadd.f32 0.0, %v1322
      %v1324 = vpop.f32.mrb[0].mxu0
      %v1325 = vadd.f32 0.0, %v1324
      %1326 = vdwg.mxu0
      %v1327 = vmul.f32 %v1323, %v610
      %v1328 = vmul.f32 %v1325, %v611
      %v1329 = vsub.f32 %v686, %v1327
      %v1330 = vsub.f32 %v687, %v1328
      %v1331 = vld [vmem:[%s11] sm:$0xff]
      %v1332 = vld [vmem:[%s11 + $0x8] sm:$0xff]
      %v1333 = vld [vmem:[%s11 + $0x10] sm:$0xff]
      %v1334 = vld [vmem:[%s11 + $0x18] sm:$0xff]
      %v1335 = vld [vmem:[%s11 + $0x20] sm:$0xff]
      %v1336 = vld [vmem:[%s11 + $0x28] sm:$0xff]
      %v1337 = vld [vmem:[%s11 + $0x30] sm:$0xff]
      %v1338 = vld [vmem:[%s11 + $0x38] sm:$0xff]
      %v1339 = vld [vmem:[%s11 + $0x40] sm:$0xff]
      %v1340 = vld [vmem:[%s11 + $0x48] sm:$0xff]
      %v1341 = vld [vmem:[%s11 + $0x50] sm:$0xff]
      %v1342 = vld [vmem:[%s11 + $0x58] sm:$0xff]
      %v1343 = vld [vmem:[%s11 + $0x60] sm:$0xff]
      %v1344 = vld [vmem:[%s11 + $0x68] sm:$0xff]
      %v1345 = vld [vmem:[%s11 + $0x70] sm:$0xff]
      %v1346 = vld [vmem:[%s11 + $0x78] sm:$0xff]
      %v1347 = vld [vmem:[%s11 + $0x80] sm:$0xff]
      %v1348 = vld [vmem:[%s11 + $0x88] sm:$0xff]
      %v1349 = vld [vmem:[%s11 + $0x90] sm:$0xff]
      %v1350 = vld [vmem:[%s11 + $0x98] sm:$0xff]
      %v1351 = vld [vmem:[%s11 + $0xa0] sm:$0xff]
      %v1352 = vld [vmem:[%s11 + $0xa8] sm:$0xff]
      %v1353 = vld [vmem:[%s11 + $0xb0] sm:$0xff]
      %v1354 = vld [vmem:[%s11 + $0xb8] sm:$0xff]
      %v1355 = vld [vmem:[%s11 + $0xc0] sm:$0xff]
      %v1356 = vld [vmem:[%s11 + $0xc8] sm:$0xff]
      %v1357 = vld [vmem:[%s11 + $0xd0] sm:$0xff]
      %v1358 = vld [vmem:[%s11 + $0xd8] sm:$0xff]
      %v1359 = vld [vmem:[%s11 + $0xe0] sm:$0xff]
      %v1360 = vld [vmem:[%s11 + $0xe8] sm:$0xff]
      %v1361 = vld [vmem:[%s11 + $0xf0] sm:$0xff]
      %v1362 = vld [vmem:[%s11 + $0xf8] sm:$0xff]
      %v1363 = vld [vmem:[%s11 + $0x100] sm:$0xff]
      %v1364 = vld [vmem:[%s11 + $0x108] sm:$0xff]
      %v1365 = vld [vmem:[%s11 + $0x110] sm:$0xff]
      %v1366 = vld [vmem:[%s11 + $0x118] sm:$0xff]
      %v1367 = vld [vmem:[%s11 + $0x120] sm:$0xff]
      %v1368 = vld [vmem:[%s11 + $0x128] sm:$0xff]
      %v1369 = vld [vmem:[%s11 + $0x130] sm:$0xff]
      %v1370 = vld [vmem:[%s11 + $0x138] sm:$0xff]
      %v1371 = vld [vmem:[%s11 + $0x140] sm:$0xff]
      %v1372 = vld [vmem:[%s11 + $0x148] sm:$0xff]
      %v1373 = vld [vmem:[%s11 + $0x150] sm:$0xff]
      %v1374 = vld [vmem:[%s11 + $0x158] sm:$0xff]
      %v1375 = vld [vmem:[%s11 + $0x160] sm:$0xff]
      %v1376 = vld [vmem:[%s11 + $0x168] sm:$0xff]
      %v1377 = vld [vmem:[%s11 + $0x170] sm:$0xff]
      %v1378 = vld [vmem:[%s11 + $0x178] sm:$0xff]
      %v1379 = vld [vmem:[%s11 + $0x180] sm:$0xff]
      %v1380 = vld [vmem:[%s11 + $0x188] sm:$0xff]
      %v1381 = vld [vmem:[%s11 + $0x190] sm:$0xff]
      %v1382 = vld [vmem:[%s11 + $0x198] sm:$0xff]
      %v1383 = vld [vmem:[%s11 + $0x1a0] sm:$0xff]
      %v1384 = vld [vmem:[%s11 + $0x1a8] sm:$0xff]
      %v1385 = vld [vmem:[%s11 + $0x1b0] sm:$0xff]
      %v1386 = vld [vmem:[%s11 + $0x1b8] sm:$0xff]
      %v1387 = vld [vmem:[%s11 + $0x1c0] sm:$0xff]
      %v1388 = vld [vmem:[%s11 + $0x1c8] sm:$0xff]
      %v1389 = vld [vmem:[%s11 + $0x1d0] sm:$0xff]
      %v1390 = vld [vmem:[%s11 + $0x1d8] sm:$0xff]
      %v1391 = vld [vmem:[%s11 + $0x1e0] sm:$0xff]
      %v1392 = vld [vmem:[%s11 + $0x1e8] sm:$0xff]
      %v1393 = vld [vmem:[%s11 + $0x1f0] sm:$0xff]
      %v1394 = vld [vmem:[%s11 + $0x1f8] sm:$0xff]
      %v1395 = vld [vmem:[%s11 + $0x200] sm:$0xff]
      %v1396 = vld [vmem:[%s11 + $0x208] sm:$0xff]
      %v1397 = vld [vmem:[%s11 + $0x210] sm:$0xff]
      %v1398 = vld [vmem:[%s11 + $0x218] sm:$0xff]
      %v1399 = vld [vmem:[%s11 + $0x220] sm:$0xff]
      %v1400 = vld [vmem:[%s11 + $0x228] sm:$0xff]
      %v1401 = vld [vmem:[%s11 + $0x230] sm:$0xff]
      %v1402 = vld [vmem:[%s11 + $0x238] sm:$0xff]
      %v1403 = vld [vmem:[%s11 + $0x240] sm:$0xff]
      %v1404 = vld [vmem:[%s11 + $0x248] sm:$0xff]
      %v1405 = vld [vmem:[%s11 + $0x250] sm:$0xff]
      %v1406 = vld [vmem:[%s11 + $0x258] sm:$0xff]
      %v1407 = vld [vmem:[%s11 + $0x260] sm:$0xff]
      %v1408 = vld [vmem:[%s11 + $0x268] sm:$0xff]
      %v1409 = vld [vmem:[%s11 + $0x270] sm:$0xff]
      %v1410 = vld [vmem:[%s11 + $0x278] sm:$0xff]
      %v1411 = vld [vmem:[%s11 + $0x280] sm:$0xff]
      %v1412 = vld [vmem:[%s11 + $0x288] sm:$0xff]
      %v1413 = vld [vmem:[%s11 + $0x290] sm:$0xff]
      %v1414 = vld [vmem:[%s11 + $0x298] sm:$0xff]
      %v1415 = vld [vmem:[%s11 + $0x2a0] sm:$0xff]
      %v1416 = vld [vmem:[%s11 + $0x2a8] sm:$0xff]
      %v1417 = vld [vmem:[%s11 + $0x2b0] sm:$0xff]
      %v1418 = vld [vmem:[%s11 + $0x2b8] sm:$0xff]
      %v1419 = vld [vmem:[%s11 + $0x2c0] sm:$0xff]
      %v1420 = vld [vmem:[%s11 + $0x2c8] sm:$0xff]
      %v1421 = vld [vmem:[%s11 + $0x2d0] sm:$0xff]
      %v1422 = vld [vmem:[%s11 + $0x2d8] sm:$0xff]
      %v1423 = vld [vmem:[%s11 + $0x2e0] sm:$0xff]
      %v1424 = vld [vmem:[%s11 + $0x2e8] sm:$0xff]
      %v1425 = vld [vmem:[%s11 + $0x2f0] sm:$0xff]
      %v1426 = vld [vmem:[%s11 + $0x2f8] sm:$0xff]
      %v1427 = vld [vmem:[%s11 + $0x300] sm:$0xff]
      %v1428 = vld [vmem:[%s11 + $0x308] sm:$0xff]
      %v1429 = vld [vmem:[%s11 + $0x310] sm:$0xff]
      %v1430 = vld [vmem:[%s11 + $0x318] sm:$0xff]
      %v1431 = vld [vmem:[%s11 + $0x320] sm:$0xff]
      %v1432 = vld [vmem:[%s11 + $0x328] sm:$0xff]
      %v1433 = vld [vmem:[%s11 + $0x330] sm:$0xff]
      %v1434 = vld [vmem:[%s11 + $0x338] sm:$0xff]
      %v1435 = vld [vmem:[%s11 + $0x340] sm:$0xff]
      %v1436 = vld [vmem:[%s11 + $0x348] sm:$0xff]
      %v1437 = vld [vmem:[%s11 + $0x350] sm:$0xff]
      %v1438 = vld [vmem:[%s11 + $0x358] sm:$0xff]
      %v1439 = vld [vmem:[%s11 + $0x360] sm:$0xff]
      %v1440 = vld [vmem:[%s11 + $0x368] sm:$0xff]
      %v1441 = vld [vmem:[%s11 + $0x370] sm:$0xff]
      %v1442 = vld [vmem:[%s11 + $0x378] sm:$0xff]
      %v1443 = vld [vmem:[%s11 + $0x380] sm:$0xff]
      %v1444 = vld [vmem:[%s11 + $0x388] sm:$0xff]
      %v1445 = vld [vmem:[%s11 + $0x390] sm:$0xff]
      %v1446 = vld [vmem:[%s11 + $0x398] sm:$0xff]
      %v1447 = vld [vmem:[%s11 + $0x3a0] sm:$0xff]
      %v1448 = vld [vmem:[%s11 + $0x3a8] sm:$0xff]
      %v1449 = vld [vmem:[%s11 + $0x3b0] sm:$0xff]
      %v1450 = vld [vmem:[%s11 + $0x3b8] sm:$0xff]
      %v1451 = vld [vmem:[%s11 + $0x3c0] sm:$0xff]
      %v1452 = vld [vmem:[%s11 + $0x3c8] sm:$0xff]
      %v1453 = vld [vmem:[%s11 + $0x3d0] sm:$0xff]
      %v1454 = vld [vmem:[%s11 + $0x3d8] sm:$0xff]
      %v1455 = vld [vmem:[%s11 + $0x3e0] sm:$0xff]
      %v1456 = vld [vmem:[%s11 + $0x3e8] sm:$0xff]
      %v1457 = vld [vmem:[%s11 + $0x3f0] sm:$0xff]
      %v1458 = vld [vmem:[%s11 + $0x3f8] sm:$0xff]
      %v1459 = vld [vmem:[%s11 + $0x400] sm:$0xff]
      %v1460 = vld [vmem:[%s11 + $0x408] sm:$0xff]
      %v1461 = vld [vmem:[%s11 + $0x410] sm:$0xff]
      %v1462 = vld [vmem:[%s11 + $0x418] sm:$0xff]
      %v1463 = vld [vmem:[%s11 + $0x420] sm:$0xff]
      %v1464 = vld [vmem:[%s11 + $0x428] sm:$0xff]
      %v1465 = vld [vmem:[%s11 + $0x430] sm:$0xff]
      %v1466 = vld [vmem:[%s11 + $0x438] sm:$0xff]
      %v1467 = vld [vmem:[%s11 + $0x440] sm:$0xff]
      %v1468 = vld [vmem:[%s11 + $0x448] sm:$0xff]
      %v1469 = vld [vmem:[%s11 + $0x450] sm:$0xff]
      %v1470 = vld [vmem:[%s11 + $0x458] sm:$0xff]
      %v1471 = vld [vmem:[%s11 + $0x460] sm:$0xff]
      %v1472 = vld [vmem:[%s11 + $0x468] sm:$0xff]
      %v1473 = vld [vmem:[%s11 + $0x470] sm:$0xff]
      %v1474 = vld [vmem:[%s11 + $0x478] sm:$0xff]
      %v1475 = vld [vmem:[%s11 + $0x480] sm:$0xff]
      %v1476 = vld [vmem:[%s11 + $0x488] sm:$0xff]
      %v1477 = vld [vmem:[%s11 + $0x490] sm:$0xff]
      %v1478 = vld [vmem:[%s11 + $0x498] sm:$0xff]
      %v1479 = vld [vmem:[%s11 + $0x4a0] sm:$0xff]
      %v1480 = vld [vmem:[%s11 + $0x4a8] sm:$0xff]
      %v1481 = vld [vmem:[%s11 + $0x4b0] sm:$0xff]
      %v1482 = vld [vmem:[%s11 + $0x4b8] sm:$0xff]
      %v1483 = vld [vmem:[%s11 + $0x4c0] sm:$0xff]
      %v1484 = vld [vmem:[%s11 + $0x4c8] sm:$0xff]
      %v1485 = vld [vmem:[%s11 + $0x4d0] sm:$0xff]
      %v1486 = vld [vmem:[%s11 + $0x4d8] sm:$0xff]
      %v1487 = vld [vmem:[%s11 + $0x4e0] sm:$0xff]
      %v1488 = vld [vmem:[%s11 + $0x4e8] sm:$0xff]
      %v1489 = vld [vmem:[%s11 + $0x4f0] sm:$0xff]
      %v1490 = vld [vmem:[%s11 + $0x4f8] sm:$0xff]
      %v1491 = vld [vmem:[%s11 + $0x500] sm:$0xff]
      %v1492 = vld [vmem:[%s11 + $0x508] sm:$0xff]
      %v1493 = vld [vmem:[%s11 + $0x510] sm:$0xff]
      %v1494 = vld [vmem:[%s11 + $0x518] sm:$0xff]
      %v1495 = vld [vmem:[%s11 + $0x520] sm:$0xff]
      %v1496 = vld [vmem:[%s11 + $0x528] sm:$0xff]
      %v1497 = vld [vmem:[%s11 + $0x530] sm:$0xff]
      %v1498 = vld [vmem:[%s11 + $0x538] sm:$0xff]
      %v1499 = vld [vmem:[%s11 + $0x540] sm:$0xff]
      %v1500 = vld [vmem:[%s11 + $0x548] sm:$0xff]
      %v1501 = vld [vmem:[%s11 + $0x550] sm:$0xff]
      %v1502 = vld [vmem:[%s11 + $0x558] sm:$0xff]
      %v1503 = vld [vmem:[%s11 + $0x560] sm:$0xff]
      %v1504 = vld [vmem:[%s11 + $0x568] sm:$0xff]
      %v1505 = vld [vmem:[%s11 + $0x570] sm:$0xff]
      %v1506 = vld [vmem:[%s11 + $0x578] sm:$0xff]
      %v1507 = vld [vmem:[%s11 + $0x580] sm:$0xff]
      %v1508 = vld [vmem:[%s11 + $0x588] sm:$0xff]
      %v1509 = vld [vmem:[%s11 + $0x590] sm:$0xff]
      %v1510 = vld [vmem:[%s11 + $0x598] sm:$0xff]
      %v1511 = vld [vmem:[%s11 + $0x5a0] sm:$0xff]
      %v1512 = vld [vmem:[%s11 + $0x5a8] sm:$0xff]
      %v1513 = vld [vmem:[%s11 + $0x5b0] sm:$0xff]
      %v1514 = vld [vmem:[%s11 + $0x5b8] sm:$0xff]
      %v1515 = vld [vmem:[%s11 + $0x5c0] sm:$0xff]
      %v1516 = vld [vmem:[%s11 + $0x5c8] sm:$0xff]
      %v1517 = vld [vmem:[%s11 + $0x5d0] sm:$0xff]
      %v1518 = vld [vmem:[%s11 + $0x5d8] sm:$0xff]
      %v1519 = vld [vmem:[%s11 + $0x5e0] sm:$0xff]
      %v1520 = vld [vmem:[%s11 + $0x5e8] sm:$0xff]
      %v1521 = vld [vmem:[%s11 + $0x5f0] sm:$0xff]
      %v1522 = vld [vmem:[%s11 + $0x5f8] sm:$0xff]
      %v1523 = vld [vmem:[%s11 + $0x600] sm:$0xff]
      %v1524 = vld [vmem:[%s11 + $0x608] sm:$0xff]
      %v1525 = vld [vmem:[%s11 + $0x610] sm:$0xff]
      %v1526 = vld [vmem:[%s11 + $0x618] sm:$0xff]
      %v1527 = vld [vmem:[%s11 + $0x620] sm:$0xff]
      %v1528 = vld [vmem:[%s11 + $0x628] sm:$0xff]
      %v1529 = vld [vmem:[%s11 + $0x630] sm:$0xff]
      %v1530 = vld [vmem:[%s11 + $0x638] sm:$0xff]
      %v1531 = vld [vmem:[%s11 + $0x640] sm:$0xff]
      %v1532 = vld [vmem:[%s11 + $0x648] sm:$0xff]
      %v1533 = vld [vmem:[%s11 + $0x650] sm:$0xff]
      %v1534 = vld [vmem:[%s11 + $0x658] sm:$0xff]
      %v1535 = vld [vmem:[%s11 + $0x660] sm:$0xff]
      %v1536 = vld [vmem:[%s11 + $0x668] sm:$0xff]
      %v1537 = vld [vmem:[%s11 + $0x670] sm:$0xff]
      %v1538 = vld [vmem:[%s11 + $0x678] sm:$0xff]
      %v1539 = vld [vmem:[%s11 + $0x680] sm:$0xff]
      %v1540 = vld [vmem:[%s11 + $0x688] sm:$0xff]
      %v1541 = vld [vmem:[%s11 + $0x690] sm:$0xff]
      %v1542 = vld [vmem:[%s11 + $0x698] sm:$0xff]
      %v1543 = vld [vmem:[%s11 + $0x6a0] sm:$0xff]
      %v1544 = vld [vmem:[%s11 + $0x6a8] sm:$0xff]
      %v1545 = vld [vmem:[%s11 + $0x6b0] sm:$0xff]
      %v1546 = vld [vmem:[%s11 + $0x6b8] sm:$0xff]
      %v1547 = vld [vmem:[%s11 + $0x6c0] sm:$0xff]
      %v1548 = vld [vmem:[%s11 + $0x6c8] sm:$0xff]
      %v1549 = vld [vmem:[%s11 + $0x6d0] sm:$0xff]
      %v1550 = vld [vmem:[%s11 + $0x6d8] sm:$0xff]
      %v1551 = vld [vmem:[%s11 + $0x6e0] sm:$0xff]
      %v1552 = vld [vmem:[%s11 + $0x6e8] sm:$0xff]
      %v1553 = vld [vmem:[%s11 + $0x6f0] sm:$0xff]
      %v1554 = vld [vmem:[%s11 + $0x6f8] sm:$0xff]
      %v1555 = vld [vmem:[%s11 + $0x700] sm:$0xff]
      %v1556 = vld [vmem:[%s11 + $0x708] sm:$0xff]
      %v1557 = vld [vmem:[%s11 + $0x710] sm:$0xff]
      %v1558 = vld [vmem:[%s11 + $0x718] sm:$0xff]
      %v1559 = vld [vmem:[%s11 + $0x720] sm:$0xff]
      %v1560 = vld [vmem:[%s11 + $0x728] sm:$0xff]
      %v1561 = vld [vmem:[%s11 + $0x730] sm:$0xff]
      %v1562 = vld [vmem:[%s11 + $0x738] sm:$0xff]
      %v1563 = vld [vmem:[%s11 + $0x740] sm:$0xff]
      %v1564 = vld [vmem:[%s11 + $0x748] sm:$0xff]
      %v1565 = vld [vmem:[%s11 + $0x750] sm:$0xff]
      %v1566 = vld [vmem:[%s11 + $0x758] sm:$0xff]
      %v1567 = vld [vmem:[%s11 + $0x760] sm:$0xff]
      %v1568 = vld [vmem:[%s11 + $0x768] sm:$0xff]
      %v1569 = vld [vmem:[%s11 + $0x770] sm:$0xff]
      %v1570 = vld [vmem:[%s11 + $0x778] sm:$0xff]
      %v1571 = vld [vmem:[%s11 + $0x780] sm:$0xff]
      %v1572 = vld [vmem:[%s11 + $0x788] sm:$0xff]
      %v1573 = vld [vmem:[%s11 + $0x790] sm:$0xff]
      %v1574 = vld [vmem:[%s11 + $0x798] sm:$0xff]
      %v1575 = vld [vmem:[%s11 + $0x7a0] sm:$0xff]
      %v1576 = vld [vmem:[%s11 + $0x7a8] sm:$0xff]
      %v1577 = vld [vmem:[%s11 + $0x7b0] sm:$0xff]
      %v1578 = vld [vmem:[%s11 + $0x7b8] sm:$0xff]
      %v1579 = vld [vmem:[%s11 + $0x7c0] sm:$0xff]
      %v1580 = vld [vmem:[%s11 + $0x7c8] sm:$0xff]
      %v1581 = vld [vmem:[%s11 + $0x7d0] sm:$0xff]
      %v1582 = vld [vmem:[%s11 + $0x7d8] sm:$0xff]
      %v1583 = vld [vmem:[%s11 + $0x7e0] sm:$0xff]
      %v1584 = vld [vmem:[%s11 + $0x7e8] sm:$0xff]
      %v1585 = vld [vmem:[%s11 + $0x7f0] sm:$0xff]
      %v1586 = vld [vmem:[%s11 + $0x7f8] sm:$0xff]
      %1587 = vmatprep.subr.mxu0 %v1332
      %1588 = vmatpush1.msra.mxu0 %v1331
      %1589 = vmatprep.subr.mxu0 %v1340
      %1590 = vmatpush1.msra.mxu0 %v1339
      %1591 = vmatprep.subr.mxu0 %v1348
      %1592 = vmatpush1.msra.mxu0 %v1347
      %1593 = vmatprep.subr.mxu0 %v1356
      %1594 = vmatpush1.msra.mxu0 %v1355
      %1595 = vmatprep.subr.mxu0 %v1364
      %1596 = vmatpush1.msra.mxu0 %v1363
      %1597 = vmatprep.subr.mxu0 %v1372
      %1598 = vmatpush1.msra.mxu0 %v1371
      %1599 = vmatprep.subr.mxu0 %v1380
      %1600 = vmatpush1.msra.mxu0 %v1379
      %1601 = vmatprep.subr.mxu0 %v1388
      %1602 = vmatpush1.msra.mxu0 %v1387
      %1603 = vmatprep.subr.mxu0 %v1396
      %1604 = vmatpush1.msra.mxu0 %v1395
      %1605 = vmatprep.subr.mxu0 %v1404
      %1606 = vmatpush1.msra.mxu0 %v1403
      %1607 = vmatprep.subr.mxu0 %v1412
      %1608 = vmatpush1.msra.mxu0 %v1411
      %1609 = vmatprep.subr.mxu0 %v1420
      %1610 = vmatpush1.msra.mxu0 %v1419
      %1611 = vmatprep.subr.mxu0 %v1428
      %1612 = vmatpush1.msra.mxu0 %v1427
      %1613 = vmatprep.subr.mxu0 %v1436
      %1614 = vmatpush1.msra.mxu0 %v1435
      %1615 = vmatprep.subr.mxu0 %v1444
      %1616 = vmatpush1.msra.mxu0 %v1443
      %1617 = vmatprep.subr.mxu0 %v1452
      %1618 = vmatpush1.msra.mxu0 %v1451
      %1619 = vmatprep.subr.mxu0 %v1460
      %1620 = vmatpush1.msra.mxu0 %v1459
      %1621 = vmatprep.subr.mxu0 %v1468
      %1622 = vmatpush1.msra.mxu0 %v1467
      %1623 = vmatprep.subr.mxu0 %v1476
      %1624 = vmatpush1.msra.mxu0 %v1475
      %1625 = vmatprep.subr.mxu0 %v1484
      %1626 = vmatpush1.msra.mxu0 %v1483
      %1627 = vmatprep.subr.mxu0 %v1492
      %1628 = vmatpush1.msra.mxu0 %v1491
      %1629 = vmatprep.subr.mxu0 %v1500
      %1630 = vmatpush1.msra.mxu0 %v1499
      %1631 = vmatprep.subr.mxu0 %v1508
      %1632 = vmatpush1.msra.mxu0 %v1507
      %1633 = vmatprep.subr.mxu0 %v1516
      %1634 = vmatpush1.msra.mxu0 %v1515
      %1635 = vmatprep.subr.mxu0 %v1524
      %1636 = vmatpush1.msra.mxu0 %v1523
      %1637 = vmatprep.subr.mxu0 %v1532
      %1638 = vmatpush1.msra.mxu0 %v1531
      %1639 = vmatprep.subr.mxu0 %v1540
      %1640 = vmatpush1.msra.mxu0 %v1539
      %1641 = vmatprep.subr.mxu0 %v1548
      %1642 = vmatpush1.msra.mxu0 %v1547
      %1643 = vmatprep.subr.mxu0 %v1556
      %1644 = vmatpush1.msra.mxu0 %v1555
      %1645 = vmatprep.subr.mxu0 %v1564
      %1646 = vmatpush1.msra.mxu0 %v1563
      %1647 = vmatprep.subr.mxu0 %v1572
      %1648 = vmatpush1.msra.mxu0 %v1571
      %1649 = vmatprep.subr.mxu0 %v1580
      %1650 = vmatpush1.msra.mxu0 %v1579
      %1651 = vmatprep.mubr.f32.mxu0 %v1325
      %1652 = vmatmul.mubr.f32.gmra.mrb[0].mxu0 %v1323
      %v1653 = vpop.f32.mrb[0].mxu0
      %v1654 = vadd.f32 0.0, %v1653
      %v1655 = vpop.f32.mrb[0].mxu0
      %v1656 = vadd.f32 0.0, %v1655
      %1657 = vdwg.mxu0
      %1658 = vmatprep.subr.mxu0 %v1334
      %1659 = vmatpush1.msra.mxu0 %v1333
      %1660 = vmatprep.subr.mxu0 %v1342
      %1661 = vmatpush1.msra.mxu0 %v1341
      %1662 = vmatprep.subr.mxu0 %v1350
      %1663 = vmatpush1.msra.mxu0 %v1349
      %1664 = vmatprep.subr.mxu0 %v1358
      %1665 = vmatpush1.msra.mxu0 %v1357
      %1666 = vmatprep.subr.mxu0 %v1366
      %1667 = vmatpush1.msra.mxu0 %v1365
      %1668 = vmatprep.subr.mxu0 %v1374
      %1669 = vmatpush1.msra.mxu0 %v1373
      %1670 = vmatprep.subr.mxu0 %v1382
      %1671 = vmatpush1.msra.mxu0 %v1381
      %1672 = vmatprep.subr.mxu0 %v1390
      %1673 = vmatpush1.msra.mxu0 %v1389
      %1674 = vmatprep.subr.mxu0 %v1398
      %1675 = vmatpush1.msra.mxu0 %v1397
      %1676 = vmatprep.subr.mxu0 %v1406
      %1677 = vmatpush1.msra.mxu0 %v1405
      %1678 = vmatprep.subr.mxu0 %v1414
      %1679 = vmatpush1.msra.mxu0 %v1413
      %1680 = vmatprep.subr.mxu0 %v1422
      %1681 = vmatpush1.msra.mxu0 %v1421
      %1682 = vmatprep.subr.mxu0 %v1430
      %1683 = vmatpush1.msra.mxu0 %v1429
      %1684 = vmatprep.subr.mxu0 %v1438
      %1685 = vmatpush1.msra.mxu0 %v1437
      %1686 = vmatprep.subr.mxu0 %v1446
      %1687 = vmatpush1.msra.mxu0 %v1445
      %1688 = vmatprep.subr.mxu0 %v1454
      %1689 = vmatpush1.msra.mxu0 %v1453
      %1690 = vmatprep.subr.mxu0 %v1462
      %1691 = vmatpush1.msra.mxu0 %v1461
      %1692 = vmatprep.subr.mxu0 %v1470
      %1693 = vmatpush1.msra.mxu0 %v1469
      %1694 = vmatprep.subr.mxu0 %v1478
      %1695 = vmatpush1.msra.mxu0 %v1477
      %1696 = vmatprep.subr.mxu0 %v1486
      %1697 = vmatpush1.msra.mxu0 %v1485
      %1698 = vmatprep.subr.mxu0 %v1494
      %1699 = vmatpush1.msra.mxu0 %v1493
      %1700 = vmatprep.subr.mxu0 %v1502
      %1701 = vmatpush1.msra.mxu0 %v1501
      %1702 = vmatprep.subr.mxu0 %v1510
      %1703 = vmatpush1.msra.mxu0 %v1509
      %1704 = vmatprep.subr.mxu0 %v1518
      %1705 = vmatpush1.msra.mxu0 %v1517
      %1706 = vmatprep.subr.mxu0 %v1526
      %1707 = vmatpush1.msra.mxu0 %v1525
      %1708 = vmatprep.subr.mxu0 %v1534
      %1709 = vmatpush1.msra.mxu0 %v1533
      %1710 = vmatprep.subr.mxu0 %v1542
      %1711 = vmatpush1.msra.mxu0 %v1541
      %1712 = vmatprep.subr.mxu0 %v1550
      %1713 = vmatpush1.msra.mxu0 %v1549
      %1714 = vmatprep.subr.mxu0 %v1558
      %1715 = vmatpush1.msra.mxu0 %v1557
      %1716 = vmatprep.subr.mxu0 %v1566
      %1717 = vmatpush1.msra.mxu0 %v1565
      %1718 = vmatprep.subr.mxu0 %v1574
      %1719 = vmatpush1.msra.mxu0 %v1573
      %1720 = vmatprep.subr.mxu0 %v1582
      %1721 = vmatpush1.msra.mxu0 %v1581
      %1722 = vmatprep.mubr.f32.mxu0 %v1325
      %1723 = vmatmul.mubr.f32.gmra.mrb[0].mxu0 %v1323
      %v1724 = vpop.f32.mrb[0].mxu0
      %v1725 = vadd.f32 0.0, %v1724
      %v1726 = vpop.f32.mrb[0].mxu0
      %v1727 = vadd.f32 0.0, %v1726
      %1728 = vdwg.mxu0
      %1729 = vmatprep.subr.mxu0 %v1336
      %1730 = vmatpush1.msra.mxu0 %v1335
      %1731 = vmatprep.subr.mxu0 %v1344
      %1732 = vmatpush1.msra.mxu0 %v1343
      %1733 = vmatprep.subr.mxu0 %v1352
      %1734 = vmatpush1.msra.mxu0 %v1351
      %1735 = vmatprep.subr.mxu0 %v1360
      %1736 = vmatpush1.msra.mxu0 %v1359
      %1737 = vmatprep.subr.mxu0 %v1368
      %1738 = vmatpush1.msra.mxu0 %v1367
      %1739 = vmatprep.subr.mxu0 %v1376
      %1740 = vmatpush1.msra.mxu0 %v1375
      %1741 = vmatprep.subr.mxu0 %v1384
      %1742 = vmatpush1.msra.mxu0 %v1383
      %1743 = vmatprep.subr.mxu0 %v1392
      %1744 = vmatpush1.msra.mxu0 %v1391
      %1745 = vmatprep.subr.mxu0 %v1400
      %1746 = vmatpush1.msra.mxu0 %v1399
      %1747 = vmatprep.subr.mxu0 %v1408
      %1748 = vmatpush1.msra.mxu0 %v1407
      %1749 = vmatprep.subr.mxu0 %v1416
      %1750 = vmatpush1.msra.mxu0 %v1415
      %1751 = vmatprep.subr.mxu0 %v1424
      %1752 = vmatpush1.msra.mxu0 %v1423
      %1753 = vmatprep.subr.mxu0 %v1432
      %1754 = vmatpush1.msra.mxu0 %v1431
      %1755 = vmatprep.subr.mxu0 %v1440
      %1756 = vmatpush1.msra.mxu0 %v1439
      %1757 = vmatprep.subr.mxu0 %v1448
      %1758 = vmatpush1.msra.mxu0 %v1447
      %1759 = vmatprep.subr.mxu0 %v1456
      %1760 = vmatpush1.msra.mxu0 %v1455
      %1761 = vmatprep.subr.mxu0 %v1464
      %1762 = vmatpush1.msra.mxu0 %v1463
      %1763 = vmatprep.subr.mxu0 %v1472
      %1764 = vmatpush1.msra.mxu0 %v1471
      %1765 = vmatprep.subr.mxu0 %v1480
      %1766 = vmatpush1.msra.mxu0 %v1479
      %1767 = vmatprep.subr.mxu0 %v1488
      %1768 = vmatpush1.msra.mxu0 %v1487
      %1769 = vmatprep.subr.mxu0 %v1496
      %1770 = vmatpush1.msra.mxu0 %v1495
      %1771 = vmatprep.subr.mxu0 %v1504
      %1772 = vmatpush1.msra.mxu0 %v1503
      %1773 = vmatprep.subr.mxu0 %v1512
      %1774 = vmatpush1.msra.mxu0 %v1511
      %1775 = vmatprep.subr.mxu0 %v1520
      %1776 = vmatpush1.msra.mxu0 %v1519
      %1777 = vmatprep.subr.mxu0 %v1528
      %1778 = vmatpush1.msra.mxu0 %v1527
      %1779 = vmatprep.subr.mxu0 %v1536
      %1780 = vmatpush1.msra.mxu0 %v1535
      %1781 = vmatprep.subr.mxu0 %v1544
      %1782 = vmatpush1.msra.mxu0 %v1543
      %1783 = vmatprep.subr.mxu0 %v1552
      %1784 = vmatpush1.msra.mxu0 %v1551
      %1785 = vmatprep.subr.mxu0 %v1560
      %1786 = vmatpush1.msra.mxu0 %v1559
      %1787 = vmatprep.subr.mxu0 %v1568
      %1788 = vmatpush1.msra.mxu0 %v1567
      %1789 = vmatprep.subr.mxu0 %v1576
      %1790 = vmatpush1.msra.mxu0 %v1575
      %1791 = vmatprep.subr.mxu0 %v1584
      %1792 = vmatpush1.msra.mxu0 %v1583
      %1793 = vmatprep.mubr.f32.mxu0 %v1325
      %1794 = vmatmul.mubr.f32.gmra.mrb[0].mxu0 %v1323
      %v1795 = vpop.f32.mrb[0].mxu0
      %v1796 = vadd.f32 0.0, %v1795
      %v1797 = vpop.f32.mrb[0].mxu0
      %v1798 = vadd.f32 0.0, %v1797
      %1799 = vdwg.mxu0
      %1800 = vmatprep.subr.mxu0 %v1338
      %1801 = vmatpush1.msra.mxu0 %v1337
      %1802 = vmatprep.subr.mxu0 %v1346
      %1803 = vmatpush1.msra.mxu0 %v1345
      %1804 = vmatprep.subr.mxu0 %v1354
      %1805 = vmatpush1.msra.mxu0 %v1353
      %1806 = vmatprep.subr.mxu0 %v1362
      %1807 = vmatpush1.msra.mxu0 %v1361
      %1808 = vmatprep.subr.mxu0 %v1370
      %1809 = vmatpush1.msra.mxu0 %v1369
      %1810 = vmatprep.subr.mxu0 %v1378
      %1811 = vmatpush1.msra.mxu0 %v1377
      %1812 = vmatprep.subr.mxu0 %v1386
      %1813 = vmatpush1.msra.mxu0 %v1385
      %1814 = vmatprep.subr.mxu0 %v1394
      %1815 = vmatpush1.msra.mxu0 %v1393
      %1816 = vmatprep.subr.mxu0 %v1402
      %1817 = vmatpush1.msra.mxu0 %v1401
      %1818 = vmatprep.subr.mxu0 %v1410
      %1819 = vmatpush1.msra.mxu0 %v1409
      %1820 = vmatprep.subr.mxu0 %v1418
      %1821 = vmatpush1.msra.mxu0 %v1417
      %1822 = vmatprep.subr.mxu0 %v1426
      %1823 = vmatpush1.msra.mxu0 %v1425
      %1824 = vmatprep.subr.mxu0 %v1434
      %1825 = vmatpush1.msra.mxu0 %v1433
      %1826 = vmatprep.subr.mxu0 %v1442
      %1827 = vmatpush1.msra.mxu0 %v1441
      %1828 = vmatprep.subr.mxu0 %v1450
      %1829 = vmatpush1.msra.mxu0 %v1449
      %1830 = vmatprep.subr.mxu0 %v1458
      %1831 = vmatpush1.msra.mxu0 %v1457
      %1832 = vmatprep.subr.mxu0 %v1466
      %1833 = vmatpush1.msra.mxu0 %v1465
      %1834 = vmatprep.subr.mxu0 %v1474
      %1835 = vmatpush1.msra.mxu0 %v1473
      %1836 = vmatprep.subr.mxu0 %v1482
      %1837 = vmatpush1.msra.mxu0 %v1481
      %1838 = vmatprep.subr.mxu0 %v1490
      %1839 = vmatpush1.msra.mxu0 %v1489
      %1840 = vmatprep.subr.mxu0 %v1498
      %1841 = vmatpush1.msra.mxu0 %v1497
      %1842 = vmatprep.subr.mxu0 %v1506
      %1843 = vmatpush1.msra.mxu0 %v1505
      %1844 = vmatprep.subr.mxu0 %v1514
      %1845 = vmatpush1.msra.mxu0 %v1513
      %1846 = vmatprep.subr.mxu0 %v1522
      %1847 = vmatpush1.msra.mxu0 %v1521
      %1848 = vmatprep.subr.mxu0 %v1530
      %1849 = vmatpush1.msra.mxu0 %v1529
      %1850 = vmatprep.subr.mxu0 %v1538
      %1851 = vmatpush1.msra.mxu0 %v1537
      %1852 = vmatprep.subr.mxu0 %v1546
      %1853 = vmatpush1.msra.mxu0 %v1545
      %1854 = vmatprep.subr.mxu0 %v1554
      %1855 = vmatpush1.msra.mxu0 %v1553
      %1856 = vmatprep.subr.mxu0 %v1562
      %1857 = vmatpush1.msra.mxu0 %v1561
      %1858 = vmatprep.subr.mxu0 %v1570
      %1859 = vmatpush1.msra.mxu0 %v1569
      %1860 = vmatprep.subr.mxu0 %v1578
      %1861 = vmatpush1.msra.mxu0 %v1577
      %1862 = vmatprep.subr.mxu0 %v1586
      %1863 = vmatpush1.msra.mxu0 %v1585
      %1864 = vmatprep.mubr.f32.mxu0 %v1325
      %1865 = vmatmul.mubr.f32.gmra.mrb[0].mxu0 %v1323
      %v1866 = vpop.f32.mrb[0].mxu0
      %v1867 = vadd.f32 0.0, %v1866
      %v1868 = vpop.f32.mrb[0].mxu0
      %v1869 = vadd.f32 0.0, %v1868
      %1870 = vdwg.mxu0
      %1871 = vmatprep.subr.mxu0 %v1332
      %1872 = vmatpush1.msra.mxu0 %v1331
      %1873 = vmatprep.subr.mxu0 %v1340
      %1874 = vmatpush1.msra.mxu0 %v1339
      %1875 = vmatprep.subr.mxu0 %v1348
      %1876 = vmatpush1.msra.mxu0 %v1347
      %1877 = vmatprep.subr.mxu0 %v1356
      %1878 = vmatpush1.msra.mxu0 %v1355
      %1879 = vmatprep.subr.mxu0 %v1364
      %1880 = vmatpush1.msra.mxu0 %v1363
      %1881 = vmatprep.subr.mxu0 %v1372
      %1882 = vmatpush1.msra.mxu0 %v1371
      %1883 = vmatprep.subr.mxu0 %v1380
      %1884 = vmatpush1.msra.mxu0 %v1379
      %1885 = vmatprep.subr.mxu0 %v1388
      %1886 = vmatpush1.msra.mxu0 %v1387
      %1887 = vmatprep.subr.mxu0 %v1396
      %1888 = vmatpush1.msra.mxu0 %v1395
      %1889 = vmatprep.subr.mxu0 %v1404
      %1890 = vmatpush1.msra.mxu0 %v1403
      %1891 = vmatprep.subr.mxu0 %v1412
      %1892 = vmatpush1.msra.mxu0 %v1411
      %1893 = vmatprep.subr.mxu0 %v1420
      %1894 = vmatpush1.msra.mxu0 %v1419
      %1895 = vmatprep.subr.mxu0 %v1428
      %1896 = vmatpush1.msra.mxu0 %v1427
      %1897 = vmatprep.subr.mxu0 %v1436
      %1898 = vmatpush1.msra.mxu0 %v1435
      %1899 = vmatprep.subr.mxu0 %v1444
      %1900 = vmatpush1.msra.mxu0 %v1443
      %1901 = vmatprep.subr.mxu0 %v1452
      %1902 = vmatpush1.msra.mxu0 %v1451
      %1903 = vmatprep.subr.mxu0 %v1460
      %1904 = vmatpush1.msra.mxu0 %v1459
      %1905 = vmatprep.subr.mxu0 %v1468
      %1906 = vmatpush1.msra.mxu0 %v1467
      %1907 = vmatprep.subr.mxu0 %v1476
      %1908 = vmatpush1.msra.mxu0 %v1475
      %1909 = vmatprep.subr.mxu0 %v1484
      %1910 = vmatpush1.msra.mxu0 %v1483
      %1911 = vmatprep.subr.mxu0 %v1492
      %1912 = vmatpush1.msra.mxu0 %v1491
      %1913 = vmatprep.subr.mxu0 %v1500
      %1914 = vmatpush1.msra.mxu0 %v1499
      %1915 = vmatprep.subr.mxu0 %v1508
      %1916 = vmatpush1.msra.mxu0 %v1507
      %1917 = vmatprep.subr.mxu0 %v1516
      %1918 = vmatpush1.msra.mxu0 %v1515
      %1919 = vmatprep.subr.mxu0 %v1524
      %1920 = vmatpush1.msra.mxu0 %v1523
      %1921 = vmatprep.subr.mxu0 %v1532
      %1922 = vmatpush1.msra.mxu0 %v1531
      %1923 = vmatprep.subr.mxu0 %v1540
      %1924 = vmatpush1.msra.mxu0 %v1539
      %1925 = vmatprep.subr.mxu0 %v1548
      %1926 = vmatpush1.msra.mxu0 %v1547
      %1927 = vmatprep.subr.mxu0 %v1556
      %1928 = vmatpush1.msra.mxu0 %v1555
      %1929 = vmatprep.subr.mxu0 %v1564
      %1930 = vmatpush1.msra.mxu0 %v1563
      %1931 = vmatprep.subr.mxu0 %v1572
      %1932 = vmatpush1.msra.mxu0 %v1571
      %1933 = vmatprep.subr.mxu0 %v1580
      %1934 = vmatpush1.msra.mxu0 %v1579
      %1935 = vmatprep.mubr.f32.mxu0 %v1330
      %1936 = vmatmul.mubr.f32.gmra.mrb[0].mxu0 %v1329
      %v1937 = vpop.f32.mrb[0].mxu0
      %v1938 = vadd.f32 0.0, %v1937
      %v1939 = vpop.f32.mrb[0].mxu0
      %v1940 = vadd.f32 0.0, %v1939
      %1941 = vdwg.mxu0
      %1942 = vmatprep.subr.mxu0 %v1334
      %1943 = vmatpush1.msra.mxu0 %v1333
      %1944 = vmatprep.subr.mxu0 %v1342
      %1945 = vmatpush1.msra.mxu0 %v1341
      %1946 = vmatprep.subr.mxu0 %v1350
      %1947 = vmatpush1.msra.mxu0 %v1349
      %1948 = vmatprep.subr.mxu0 %v1358
      %1949 = vmatpush1.msra.mxu0 %v1357
      %1950 = vmatprep.subr.mxu0 %v1366
      %1951 = vmatpush1.msra.mxu0 %v1365
      %1952 = vmatprep.subr.mxu0 %v1374
      %1953 = vmatpush1.msra.mxu0 %v1373
      %1954 = vmatprep.subr.mxu0 %v1382
      %1955 = vmatpush1.msra.mxu0 %v1381
      %1956 = vmatprep.subr.mxu0 %v1390
      %1957 = vmatpush1.msra.mxu0 %v1389
      %1958 = vmatprep.subr.mxu0 %v1398
      %1959 = vmatpush1.msra.mxu0 %v1397
      %1960 = vmatprep.subr.mxu0 %v1406
      %1961 = vmatpush1.msra.mxu0 %v1405
      %1962 = vmatprep.subr.mxu0 %v1414
      %1963 = vmatpush1.msra.mxu0 %v1413
      %1964 = vmatprep.subr.mxu0 %v1422
      %1965 = vmatpush1.msra.mxu0 %v1421
      %1966 = vmatprep.subr.mxu0 %v1430
      %1967 = vmatpush1.msra.mxu0 %v1429
      %1968 = vmatprep.subr.mxu0 %v1438
      %1969 = vmatpush1.msra.mxu0 %v1437
      %1970 = vmatprep.subr.mxu0 %v1446
      %1971 = vmatpush1.msra.mxu0 %v1445
      %1972 = vmatprep.subr.mxu0 %v1454
      %1973 = vmatpush1.msra.mxu0 %v1453
      %1974 = vmatprep.subr.mxu0 %v1462
      %1975 = vmatpush1.msra.mxu0 %v1461
      %1976 = vmatprep.subr.mxu0 %v1470
      %1977 = vmatpush1.msra.mxu0 %v1469
      %1978 = vmatprep.subr.mxu0 %v1478
      %1979 = vmatpush1.msra.mxu0 %v1477
      %1980 = vmatprep.subr.mxu0 %v1486
      %1981 = vmatpush1.msra.mxu0 %v1485
      %1982 = vmatprep.subr.mxu0 %v1494
      %1983 = vmatpush1.msra.mxu0 %v1493
      %1984 = vmatprep.subr.mxu0 %v1502
      %1985 = vmatpush1.msra.mxu0 %v1501
      %1986 = vmatprep.subr.mxu0 %v1510
      %1987 = vmatpush1.msra.mxu0 %v1509
      %1988 = vmatprep.subr.mxu0 %v1518
      %1989 = vmatpush1.msra.mxu0 %v1517
      %1990 = vmatprep.subr.mxu0 %v1526
      %1991 = vmatpush1.msra.mxu0 %v1525
      %1992 = vmatprep.subr.mxu0 %v1534
      %1993 = vmatpush1.msra.mxu0 %v1533
      %1994 = vmatprep.subr.mxu0 %v1542
      %1995 = vmatpush1.msra.mxu0 %v1541
      %1996 = vmatprep.subr.mxu0 %v1550
      %1997 = vmatpush1.msra.mxu0 %v1549
      %1998 = vmatprep.subr.mxu0 %v1558
      %1999 = vmatpush1.msra.mxu0 %v1557
      %2000 = vmatprep.subr.mxu0 %v1566
      %2001 = vmatpush1.msra.mxu0 %v1565
      %2002 = vmatprep.subr.mxu0 %v1574
      %2003 = vmatpush1.msra.mxu0 %v1573
      %2004 = vmatprep.subr.mxu0 %v1582
      %2005 = vmatpush1.msra.mxu0 %v1581
      %2006 = vmatprep.mubr.f32.mxu0 %v1330
      %2007 = vmatmul.mubr.f32.gmra.mrb[0].mxu0 %v1329
      %v2008 = vpop.f32.mrb[0].mxu0
      %v2009 = vadd.f32 0.0, %v2008
      %v2010 = vpop.f32.mrb[0].mxu0
      %v2011 = vadd.f32 0.0, %v2010
      %2012 = vdwg.mxu0
      %2013 = vmatprep.subr.mxu0 %v1336
      %2014 = vmatpush1.msra.mxu0 %v1335
      %2015 = vmatprep.subr.mxu0 %v1344
      %2016 = vmatpush1.msra.mxu0 %v1343
      %2017 = vmatprep.subr.mxu0 %v1352
      %2018 = vmatpush1.msra.mxu0 %v1351
      %2019 = vmatprep.subr.mxu0 %v1360
      %2020 = vmatpush1.msra.mxu0 %v1359
      %2021 = vmatprep.subr.mxu0 %v1368
      %2022 = vmatpush1.msra.mxu0 %v1367
      %2023 = vmatprep.subr.mxu0 %v1376
      %2024 = vmatpush1.msra.mxu0 %v1375
      %2025 = vmatprep.subr.mxu0 %v1384
      %2026 = vmatpush1.msra.mxu0 %v1383
      %2027 = vmatprep.subr.mxu0 %v1392
      %2028 = vmatpush1.msra.mxu0 %v1391
      %2029 = vmatprep.subr.mxu0 %v1400
      %2030 = vmatpush1.msra.mxu0 %v1399
      %2031 = vmatprep.subr.mxu0 %v1408
      %2032 = vmatpush1.msra.mxu0 %v1407
      %2033 = vmatprep.subr.mxu0 %v1416
      %2034 = vmatpush1.msra.mxu0 %v1415
      %2035 = vmatprep.subr.mxu0 %v1424
      %2036 = vmatpush1.msra.mxu0 %v1423
      %2037 = vmatprep.subr.mxu0 %v1432
      %2038 = vmatpush1.msra.mxu0 %v1431
      %2039 = vmatprep.subr.mxu0 %v1440
      %2040 = vmatpush1.msra.mxu0 %v1439
      %2041 = vmatprep.subr.mxu0 %v1448
      %2042 = vmatpush1.msra.mxu0 %v1447
      %2043 = vmatprep.subr.mxu0 %v1456
      %2044 = vmatpush1.msra.mxu0 %v1455
      %2045 = vmatprep.subr.mxu0 %v1464
      %2046 = vmatpush1.msra.mxu0 %v1463
      %2047 = vmatprep.subr.mxu0 %v1472
      %2048 = vmatpush1.msra.mxu0 %v1471
      %2049 = vmatprep.subr.mxu0 %v1480
      %2050 = vmatpush1.msra.mxu0 %v1479
      %2051 = vmatprep.subr.mxu0 %v1488
      %2052 = vmatpush1.msra.mxu0 %v1487
      %2053 = vmatprep.subr.mxu0 %v1496
      %2054 = vmatpush1.msra.mxu0 %v1495
      %2055 = vmatprep.subr.mxu0 %v1504
      %2056 = vmatpush1.msra.mxu0 %v1503
      %2057 = vmatprep.subr.mxu0 %v1512
      %2058 = vmatpush1.msra.mxu0 %v1511
      %2059 = vmatprep.subr.mxu0 %v1520
      %2060 = vmatpush1.msra.mxu0 %v1519
      %2061 = vmatprep.subr.mxu0 %v1528
      %2062 = vmatpush1.msra.mxu0 %v1527
      %2063 = vmatprep.subr.mxu0 %v1536
      %2064 = vmatpush1.msra.mxu0 %v1535
      %2065 = vmatprep.subr.mxu0 %v1544
      %2066 = vmatpush1.msra.mxu0 %v1543
      %2067 = vmatprep.subr.mxu0 %v1552
      %2068 = vmatpush1.msra.mxu0 %v1551
      %2069 = vmatprep.subr.mxu0 %v1560
      %2070 = vmatpush1.msra.mxu0 %v1559
      %2071 = vmatprep.subr.mxu0 %v1568
      %2072 = vmatpush1.msra.mxu0 %v1567
      %2073 = vmatprep.subr.mxu0 %v1576
      %2074 = vmatpush1.msra.mxu0 %v1575
      %2075 = vmatprep.subr.mxu0 %v1584
      %2076 = vmatpush1.msra.mxu0 %v1583
      %2077 = vmatprep.mubr.f32.mxu0 %v1330
      %2078 = vmatmul.mubr.f32.gmra.mrb[0].mxu0 %v1329
      %v2079 = vpop.f32.mrb[0].mxu0
      %v2080 = vadd.f32 0.0, %v2079
      %v2081 = vpop.f32.mrb[0].mxu0
      %v2082 = vadd.f32 0.0, %v2081
      %2083 = vdwg.mxu0
      %2084 = vmatprep.subr.mxu0 %v1338
      %2085 = vmatpush1.msra.mxu0 %v1337
      %2086 = vmatprep.subr.mxu0 %v1346
      %2087 = vmatpush1.msra.mxu0 %v1345
      %2088 = vmatprep.subr.mxu0 %v1354
      %2089 = vmatpush1.msra.mxu0 %v1353
      %2090 = vmatprep.subr.mxu0 %v1362
      %2091 = vmatpush1.msra.mxu0 %v1361
      %2092 = vmatprep.subr.mxu0 %v1370
      %2093 = vmatpush1.msra.mxu0 %v1369
      %2094 = vmatprep.subr.mxu0 %v1378
      %2095 = vmatpush1.msra.mxu0 %v1377
      %2096 = vmatprep.subr.mxu0 %v1386
      %2097 = vmatpush1.msra.mxu0 %v1385
      %2098 = vmatprep.subr.mxu0 %v1394
      %2099 = vmatpush1.msra.mxu0 %v1393
      %2100 = vmatprep.subr.mxu0 %v1402
      %2101 = vmatpush1.msra.mxu0 %v1401
      %2102 = vmatprep.subr.mxu0 %v1410
      %2103 = vmatpush1.msra.mxu0 %v1409
      %2104 = vmatprep.subr.mxu0 %v1418
      %2105 = vmatpush1.msra.mxu0 %v1417
      %2106 = vmatprep.subr.mxu0 %v1426
      %2107 = vmatpush1.msra.mxu0 %v1425
      %2108 = vmatprep.subr.mxu0 %v1434
      %2109 = vmatpush1.msra.mxu0 %v1433
      %2110 = vmatprep.subr.mxu0 %v1442
      %2111 = vmatpush1.msra.mxu0 %v1441
      %2112 = vmatprep.subr.mxu0 %v1450
      %2113 = vmatpush1.msra.mxu0 %v1449
      %2114 = vmatprep.subr.mxu0 %v1458
      %2115 = vmatpush1.msra.mxu0 %v1457
      %2116 = vmatprep.subr.mxu0 %v1466
      %2117 = vmatpush1.msra.mxu0 %v1465
      %2118 = vmatprep.subr.mxu0 %v1474
      %2119 = vmatpush1.msra.mxu0 %v1473
      %2120 = vmatprep.subr.mxu0 %v1482
      %2121 = vmatpush1.msra.mxu0 %v1481
      %2122 = vmatprep.subr.mxu0 %v1490
      %2123 = vmatpush1.msra.mxu0 %v1489
      %2124 = vmatprep.subr.mxu0 %v1498
      %2125 = vmatpush1.msra.mxu0 %v1497
      %2126 = vmatprep.subr.mxu0 %v1506
      %2127 = vmatpush1.msra.mxu0 %v1505
      %2128 = vmatprep.subr.mxu0 %v1514
      %2129 = vmatpush1.msra.mxu0 %v1513
      %2130 = vmatprep.subr.mxu0 %v1522
      %2131 = vmatpush1.msra.mxu0 %v1521
      %2132 = vmatprep.subr.mxu0 %v1530
      %2133 = vmatpush1.msra.mxu0 %v1529
      %2134 = vmatprep.subr.mxu0 %v1538
      %2135 = vmatpush1.msra.mxu0 %v1537
      %2136 = vmatprep.subr.mxu0 %v1546
      %2137 = vmatpush1.msra.mxu0 %v1545
      %2138 = vmatprep.subr.mxu0 %v1554
      %2139 = vmatpush1.msra.mxu0 %v1553
      %2140 = vmatprep.subr.mxu0 %v1562
      %2141 = vmatpush1.msra.mxu0 %v1561
      %2142 = vmatprep.subr.mxu0 %v1570
      %2143 = vmatpush1.msra.mxu0 %v1569
      %2144 = vmatprep.subr.mxu0 %v1578
      %2145 = vmatpush1.msra.mxu0 %v1577
      %2146 = vmatprep.subr.mxu0 %v1586
      %2147 = vmatpush1.msra.mxu0 %v1585
      %2148 = vmatprep.mubr.f32.mxu0 %v1330
      %2149 = vmatmul.mubr.f32.gmra.mrb[0].mxu0 %v1329
      %v2150 = vpop.f32.mrb[0].mxu0
      %v2151 = vadd.f32 0.0, %v2150
      %v2152 = vpop.f32.mrb[0].mxu0
      %v2153 = vadd.f32 0.0, %v2152
      %2154 = vdwg.mxu0
      %v2159 = vcombine.high %v456, %v456
      %v2160 = vcombine.high %v457, %v457
      %v2161 = vcombine.high %v458, %v458
      %v2162 = vcombine.high %v459, %v459
      %v2167 = vmul.f32 %v1654, %v456
      %v2168 = vmul.f32 %v1656, %v2159
      %v2169 = vmul.f32 %v1725, %v457
      %v2170 = vmul.f32 %v1727, %v2160
      %v2171 = vmul.f32 %v1796, %v458
      %v2172 = vmul.f32 %v1798, %v2161
      %v2173 = vmul.f32 %v1867, %v459
      %v2174 = vmul.f32 %v1869, %v2162
      %v2175 = vadd.f32 %v2167, %v1938
      %v2176 = vadd.f32 %v2168, %v1940
      %v2177 = vadd.f32 %v2169, %v2009
      %v2178 = vadd.f32 %v2170, %v2011
      %v2179 = vadd.f32 %v2171, %v2080
      %v2180 = vadd.f32 %v2172, %v2082
      %v2181 = vadd.f32 %v2173, %v2151
      %v2182 = vadd.f32 %v2174, %v2153
      %v2183 = vmax.f32 %v2175, 0.0
      %v2184 = vmax.f32 %v2176, 0.0
      %v2185 = vmax.f32 %v2177, 0.0
      %v2186 = vmax.f32 %v2178, 0.0
      %v2187 = vmax.f32 %v2179, 0.0
      %v2188 = vmax.f32 %v2180, 0.0
      %v2189 = vmax.f32 %v2181, 0.0
      %v2190 = vmax.f32 %v2182, 0.0
      %v2191 = vmin.f32 %v2183, 1.0
      %v2192 = vmin.f32 %v2184, 1.0
      %v2193 = vmin.f32 %v2185, 1.0
      %v2194 = vmin.f32 %v2186, 1.0
      %v2195 = vmin.f32 %v2187, 1.0
      %v2196 = vmin.f32 %v2188, 1.0
      %v2197 = vmin.f32 %v2189, 1.0
      %v2198 = vmin.f32 %v2190, 1.0
      %v2207 = vcombine.low %v2191, %v2192
      %v2208 = vcombine.low %v2193, %v2194
      %v2209 = vcombine.low %v2195, %v2196
      %v2210 = vcombine.low %v2197, %v2198
      %2215 = vst [vmem:[%s453] sm:$0x77] %v2207
      %2216 = vst [vmem:[%s453 + $0x8] sm:$0x77] %v2208
      %2217 = vst [vmem:[%s453 + $0x10] sm:$0x77] %v2209
      %2218 = vst [vmem:[%s453 + $0x18] sm:$0x77] %v2210
      %p2219 = scmp.lt.s32.totalorder %s23, 1
      %s2220 = scalar_select %p2219, %s23, 1
      %s2221 = smul.addr %s2220, 8
      %s2222 = smul.addr %s2221, 4
      %s2223 = scalar_lea.vmem %s12, %s2222
      // Predicated region
      $region69: #{deep_guided_filter_convgf.1} parent=67 // pred_check
        %p2224 = pneg %p308
      $region70: #{deep_guided_filter_convgf.1} parent=67 // pred_check_branch
        %2226 = sbr.rel (%p2224) target = $region72
      $region71: #{deep_guided_filter_convgf.1} parent=67 // pred_region
        _
      $region72: #{deep_guided_filter_convgf.1} parent=67 // pred_fallthru
        _
    $region68: #{deep_guided_filter_convgf.1} parent=5 // pred_fallthru
      _
    %p2227 = scmp.le.s32.totalorder 2, %s18
    // Predicated region
    $region73: #{deep_guided_filter_convgf.1} parent=5 // pred_check
      %p2228 = pneg %p2227
    $region74: #{deep_guided_filter_convgf.1} parent=5 // pred_check_branch
      %2230 = sbr.rel (%p2228) target = $region76
    $region75: #{deep_guided_filter_convgf.1} parent=5 // pred_region
      %s2231 = ssub.s32 %s18, 2
      // Predicated region
      $region77: #{deep_guided_filter_convgf.1} parent=75 // pred_check
        %p2232 = pneg %p314
      $region78: #{deep_guided_filter_convgf.1} parent=75 // pred_check_branch
        %2234 = sbr.rel (%p2232) target = $region80
      $region79: #{deep_guided_filter_convgf.1} parent=75 // pred_region
        %p2235 = scmp.lt.s32.totalorder %s24, 1
        %s2236 = scalar_select %p2235, %s24, 1
        %s2237 = smul.addr %s2236, 8
        %s2238 = smul.addr %s2237, 4
        %s2239 = scalar_lea.vmem %s12, %s2238
      $region80: #{deep_guided_filter_convgf.1} parent=75 // pred_fallthru
        _
    $region76: #{deep_guided_filter_convgf.1} parent=5 // pred_fallthru
      _
  $region6: #{deep_guided_filter_convgf.1} parent=0 // loop_footer
    %s22 = sadd.s32 1, %s18
  $region7: #{deep_guided_filter_convgf.1} parent=0 // loop_footer_branch
    %17 = sbr.rel target = $region3
  $region8: #{deep_guided_filter_convgf.1} parent=0 // loop_exit
    _

</llo_original>
